<compile_context>
chip_gen: v7x
topology: tpu7x:2x2x1
jax: 0.10.0
libtpu: 0.0.40
codegen_flags: <defaults>
</compile_context>

<pallas_src>
import functools

import jax
import jax.numpy as jnp
from jax.experimental import pallas as pl
from jax.experimental.pallas import tpu as pltpu


def _triple(v):
    if isinstance(v, (tuple, list)):
        assert len(v) == 3
        return tuple(int(e) for e in v)
    return (int(v),) * 3


def _ds(start, size, stride):
    """pl.ds helper: only pass a stride when it is non-trivial."""
    if stride == 1:
        return pl.ds(start, size)
    return pl.ds(start, size, stride=stride)


def _pick_h_tile(hout, wout, c):
    """Rows per register-resident accumulator slab (target ~<= 8 f32 vregs)."""
    vregs_per_row = (-(-wout // 8)) * (-(-c // 128))
    cap = max(1, 8 // vregs_per_row)
    cap = min(cap, hout)
    for d in range(cap, 0, -1):
        if hout % d == 0:
            return d
    return 1


def _depthwise_conv3d_kernel(x_ref, w_ref, o_ref, *, kdims, strides, dilations,
                             td, h_tile, mul_dtype):
    """One grid step: output-depth tile `t` of batch element `b`.

    x_ref : (1, Dp, Hp, Wp, C)   zero-padded input, channels on lanes
    w_ref : (KD*KH*KW, C)        tap-major per-channel weights
    o_ref : (1, td, Hout, Wout, C)
    """
    KD, KH, KW = kdims
    sd, sh, sw = strides
    dd, dh, dw = dilations
    _, _, Hout, Wout, C = o_ref.shape
    n_taps = KD * KH * KW
    n_h = Hout // h_tile

    t = pl.program_id(1)
    d_base = t * (td * sd)
    if td * sd > 1:
        d_base = pl.multiple_of(d_base, td * sd)

    # Hoisted out of all loops: per-tap weight rows, cast once and
    # pre-broadcast across the Wout sublanes (JAX does not CSE
    # broadcast_in_dim, so doing this inside the unrolled tap loop would emit
    # K^3 broadcasts per loop body).
    w_all = w_ref[...].astype(mul_dtype)                       # (n_taps, C)
    w_rows = [jnp.broadcast_to(w_all[k].reshape(1, 1, C), (1, Wout, C))
              for k in range(n_taps)]

    def depth_body(od, carry):
        # Global output depth plane = t*td + od ; tap kd reads padded input
        # depth  d_base + od*sd + kd*dd.
        d_in0 = d_base + od * sd
        for hb in range(n_h):                 # static: few, large row blocks
            h_out0 = hb * h_tile
            h_in0 = h_out0 * sh
            acc = None                        # (h_tile, Wout, C) f32, in vregs
            for kd in range(KD):              # fully unrolled K^3 tap loop
                for kh in range(KH):
                    for kw in range(KW):
                        # NOTE: kw offsets are sublane-misaligned window loads;
                        # an aligned-load + pltpu.roll variant could move the
                        # shift onto the (idle) XLU, left as a micro-opt.
                        xs = x_ref[0,
                                   d_in0 + kd * dd,
                                   _ds(h_in0 + kh * dh, h_tile, sh),
                                   _ds(kw * dw, Wout, sw),
                                   :]
                        tap = (kd * KH + kh) * KW + kw
                        prod = (xs.astype(mul_dtype) * w_rows[tap]
                                ).astype(jnp.float32)
                        acc = prod if acc is None else acc + prod
            o_ref[0, od, pl.ds(h_out0, h_tile), :, :] = acc.astype(o_ref.dtype)
        return carry

    jax.lax.fori_loop(0, td, depth_body, 0)


def separable_conv3d(x, w, *, stride=1, padding=0, dilation=1, bias=None,
                     multiply_dtype=None):
    """Depthwise 3-D convolution (SeparableConv3d.forward).

    x : (B, C, D, H, W)       NCDHW, PyTorch layout
    w : (C, 1, KD, KH, KW)    PyTorch grouped-conv weight layout (groups=C)
    multiply_dtype : optional dtype for the per-tap multiply (accumulation is
        always f32).  Leave None (=f32) on v5e; jnp.bfloat16 is profitable on
        v6e/v7x when x/w are bf16.
    """
    B, C, D, H, W = x.shape
    KD, KH, KW = (int(k) for k in w.shape[2:])
    sd, sh, sw = _triple(stride)
    pd, ph, pw = _triple(padding)
    dd, dh, dw = _triple(dilation)

    Dout = (D + 2 * pd - dd * (KD - 1) - 1) // sd + 1
    Hout = (H + 2 * ph - dh * (KH - 1) - 1) // sh + 1
    Wout = (W + 2 * pw - dw * (KW - 1) - 1) // sw + 1

    # Channels-last + explicit zero padding (halo handled here, not in-kernel).
    x_cl = jnp.transpose(x, (0, 2, 3, 4, 1))
    xp = jnp.pad(x_cl, ((0, 0), (pd, pd), (ph, ph), (pw, pw), (0, 0)))
    Dp, Hp, Wp = D + 2 * pd, H + 2 * ph, W + 2 * pw

    # (taps, C): tap-major weights, channels on lanes.
    w_taps = jnp.transpose(w[:, 0], (1, 2, 3, 0)).reshape(KD * KH * KW, C)

    elt = jnp.dtype(x.dtype).itemsize
    in_block = Dp * Hp * Wp * C * elt
    w_bytes = KD * KH * KW * C * elt

    # Physical VMEM (fallback 64 MiB = v7x, the smallest in the fleet); claim
    # at most ~60% so XLA keeps headroom for the surrounding transpose/pad ops.
    try:
        phys_vmem = int(pltpu.get_tpu_info().vmem_capacity_bytes)
    except Exception:  # not on TPU / attribute mismatch
        phys_vmem = 64 * 2 ** 20
    vmem_cap = int(phys_vmem * 0.6)
    headroom = 4 * 2 ** 20   # Mosaic internal scratch + in-kernel temporaries

    def _need(td_, n_in_buf):
        return (n_in_buf * in_block + 2 * td_ * Hout * Wout * C * elt
                + 2 * w_bytes + headroom)

    def _pick_td(n_in_buf):
        best, best_need = 1, _need(1, n_in_buf)
        for cand in range(1, Dout + 1):
            if Dout % cand:
                continue
            need = _need(cand, n_in_buf)
            if need <= vmem_cap:
                best, best_need = cand, need
        return best, best_need

    def _make_x_spec(single_buffer):
        if single_buffer:
            return pl.BlockSpec((1, Dp, Hp, Wp, C),
                                lambda b, t: (b, 0, 0, 0, 0),
                                pipeline_mode=pl.Buffered(1))
        return pl.BlockSpec((1, Dp, Hp, Wp, C), lambda b, t: (b, 0, 0, 0, 0))

    try:        # pipeline_mode is a newer BlockSpec kwarg; probe availability.
        _make_x_spec(True)
        buffered_available = True
    except Exception:
        buffered_available = False

    # Prefer td = Dout (one grid step per batch).  Only when the
    # double-buffered whole-volume input forces smaller depth tiles do we
    # single-buffer the (then grid-invariant-in-t) input block.
    td, need = _pick_td(n_in_buf=2)
    single_buffer_input = False
    if td < Dout and buffered_available:
        td, need = _pick_td(n_in_buf=1)
        single_buffer_input = True
    n_td = Dout // td
    # TODO(synk): for volumes whose padded per-batch slab exceeds ~60% of VMEM
    # even at td=1, stream a halo'd depth window from HBM instead
    # (memory_space=pl.ANY + manual double-buffered pltpu.make_async_copy).

    h_tile = _pick_h_tile(Hout, Wout, C)
    mul_dtype = (jnp.dtype(multiply_dtype) if multiply_dtype is not None
                 else jnp.float32)

    kernel = functools.partial(
        _depthwise_conv3d_kernel,
        kdims=(KD, KH, KW), strides=(sd, sh, sw), dilations=(dd, dh, dw),
        td=td, h_tile=h_tile, mul_dtype=mul_dtype)

    x_spec = _make_x_spec(single_buffer_input)
    vmem_limit = int(min(vmem_cap, max(need, 16 * 2 ** 20)))

    flops = 2 * B * Dout * Hout * Wout * C * KD * KH * KW
    bytes_accessed = (B * Dp * Hp * Wp * C
                      + B * Dout * Hout * Wout * C
                      + KD * KH * KW * C) * elt

    out_cl = pl.pallas_call(
        kernel,
        out_shape=jax.ShapeDtypeStruct((B, Dout, Hout, Wout, C), x.dtype),
        grid=(B, n_td),
        in_specs=[
            x_spec,
            pl.BlockSpec((KD * KH * KW, C), lambda b, t: (0, 0)),
        ],
        out_specs=pl.BlockSpec((1, td, Hout, Wout, C),
                               lambda b, t: (b, t, 0, 0, 0)),
        compiler_params=pltpu.CompilerParams(
            # Shard only the batch axis across TensorCores (v7x megacore);
            # sharding the depth-tile axis would make both cores DMA the
            # entire padded input volume.
            dimension_semantics=("parallel", "arbitrary"),
            vmem_limit_bytes=vmem_limit),
        cost_estimate=pl.CostEstimate(flops=flops, transcendentals=0,
                                      bytes_accessed=bytes_accessed),
    )(xp, w_taps)

    out = jnp.transpose(out_cl, (0, 4, 1, 2, 3))  # back to NCDHW
    if bias is not None:  # module default is bias=False
        out = out + bias.reshape(1, C, 1, 1, 1)
    return out


def _reference(x, w, stride, padding, dilation):
    sd, sh, sw = _triple(stride)
    pd, ph, pw = _triple(padding)
    dd, dh, dw = _triple(dilation)
    return jax.lax.conv_general_dilated(
        x, w,
        window_strides=(sd, sh, sw),
        padding=[(pd, pd), (ph, ph), (pw, pw)],
        rhs_dilation=(dd, dh, dw),
        dimension_numbers=("NCDHW", "OIDHW", "NCDHW"),
        feature_group_count=x.shape[1],
        precision=jax.lax.Precision.HIGHEST)


if __name__ == "__main__":
    # Small but lane-dense demo: channels (=128) ride the 128-wide lane axis.
    B, C, D, H, W = 2, 128, 8, 8, 8
    K, stride, padding, dilation = 3, 1, 1, 1

    key = jax.random.PRNGKey(0)
    kx, kw = jax.random.split(key)
    x = jax.random.normal(kx, (B, C, D, H, W), dtype=jnp.float32)
    w = jax.random.normal(kw, (C, 1, K, K, K), dtype=jnp.float32) * 0.1

    out = separable_conv3d(x, w, stride=stride, padding=padding,
                           dilation=dilation)
    jax.block_until_ready(out)
    assert out.shape == (B, C, D, H, W), out.shape

    ref = _reference(x, w, stride, padding, dilation)
    err = float(jnp.max(jnp.abs(out - ref)))
    assert jnp.allclose(out, ref, atol=1e-4, rtol=1e-4), f"max abs err {err}"

    print("KERNEL_OK")
</pallas_src>

<mosaic_0001>
module attributes {stable_mosaic.version = 11 : i64} {
  func.func @_depthwise_conv3d_kernel(%arg0: i32, %arg1: i32, %arg2: memref<1x10x10x10x128xf32, #tpu.memory_space<vmem>>, %arg3: memref<27x128xf32, #tpu.memory_space<vmem>>, %arg4: memref<1x8x8x8x128xf32, #tpu.memory_space<vmem>>) attributes {dimension_semantics = [#tpu.dimension_semantics<parallel>, #tpu.dimension_semantics<arbitrary>], iteration_bounds = array<i64: 2, 1>, scalar_prefetch = 0 : i64, scratch_operands = 0 : i64, tpu.core_type = #tpu.core_type<tc>, window_params = [{transform_indices = @transform_0, window_bounds = array<i64: 1, 10, 10, 10, 128>}, {pipeline_mode = #tpu.pipeline_mode<synchronous>, transform_indices = @transform_1, window_bounds = array<i64: 27, 128>}, {transform_indices = @transform_2, window_bounds = array<i64: 1, 8, 8, 8, 128>}]} {
    %c8_i32 = arith.constant 8 : i32
    %0 = arith.muli %arg1, %c8_i32 : i32
    %1 = tpu.assume_multiple %0, 8 : i32
    %c0 = arith.constant 0 : index
    %c0_0 = arith.constant 0 : index
    %2 = vector.load %arg3[%c0, %c0_0] : memref<27x128xf32, #tpu.memory_space<vmem>>, vector<27x128xf32>
    %3 = vector.extract_strided_slice %2 {offsets = [0, 0], sizes = [1, 128], strides = [1, 1]} : vector<27x128xf32> to vector<1x128xf32>
    %4 = vector.shape_cast %3 : vector<1x128xf32> to vector<128xf32>
    %5 = vector.shape_cast %4 : vector<128xf32> to vector<1x1x128xf32>
    %6 = vector.shape_cast %5 : vector<1x1x128xf32> to vector<1x1x128xf32>
    %7 = vector.broadcast %6 : vector<1x1x128xf32> to vector<1x8x128xf32>
    %8 = vector.extract_strided_slice %2 {offsets = [1, 0], sizes = [1, 128], strides = [1, 1]} : vector<27x128xf32> to vector<1x128xf32>
    %9 = vector.shape_cast %8 : vector<1x128xf32> to vector<128xf32>
    %10 = vector.shape_cast %9 : vector<128xf32> to vector<1x1x128xf32>
    %11 = vector.shape_cast %10 : vector<1x1x128xf32> to vector<1x1x128xf32>
    %12 = vector.broadcast %11 : vector<1x1x128xf32> to vector<1x8x128xf32>
    %13 = vector.extract_strided_slice %2 {offsets = [2, 0], sizes = [1, 128], strides = [1, 1]} : vector<27x128xf32> to vector<1x128xf32>
    %14 = vector.shape_cast %13 : vector<1x128xf32> to vector<128xf32>
    %15 = vector.shape_cast %14 : vector<128xf32> to vector<1x1x128xf32>
    %16 = vector.shape_cast %15 : vector<1x1x128xf32> to vector<1x1x128xf32>
    %17 = vector.broadcast %16 : vector<1x1x128xf32> to vector<1x8x128xf32>
    %18 = vector.extract_strided_slice %2 {offsets = [3, 0], sizes = [1, 128], strides = [1, 1]} : vector<27x128xf32> to vector<1x128xf32>
    %19 = vector.shape_cast %18 : vector<1x128xf32> to vector<128xf32>
    %20 = vector.shape_cast %19 : vector<128xf32> to vector<1x1x128xf32>
    %21 = vector.shape_cast %20 : vector<1x1x128xf32> to vector<1x1x128xf32>
    %22 = vector.broadcast %21 : vector<1x1x128xf32> to vector<1x8x128xf32>
    %23 = vector.extract_strided_slice %2 {offsets = [4, 0], sizes = [1, 128], strides = [1, 1]} : vector<27x128xf32> to vector<1x128xf32>
    %24 = vector.shape_cast %23 : vector<1x128xf32> to vector<128xf32>
    %25 = vector.shape_cast %24 : vector<128xf32> to vector<1x1x128xf32>
    %26 = vector.shape_cast %25 : vector<1x1x128xf32> to vector<1x1x128xf32>
    %27 = vector.broadcast %26 : vector<1x1x128xf32> to vector<1x8x128xf32>
    %28 = vector.extract_strided_slice %2 {offsets = [5, 0], sizes = [1, 128], strides = [1, 1]} : vector<27x128xf32> to vector<1x128xf32>
    %29 = vector.shape_cast %28 : vector<1x128xf32> to vector<128xf32>
    %30 = vector.shape_cast %29 : vector<128xf32> to vector<1x1x128xf32>
    %31 = vector.shape_cast %30 : vector<1x1x128xf32> to vector<1x1x128xf32>
    %32 = vector.broadcast %31 : vector<1x1x128xf32> to vector<1x8x128xf32>
    %33 = vector.extract_strided_slice %2 {offsets = [6, 0], sizes = [1, 128], strides = [1, 1]} : vector<27x128xf32> to vector<1x128xf32>
    %34 = vector.shape_cast %33 : vector<1x128xf32> to vector<128xf32>
    %35 = vector.shape_cast %34 : vector<128xf32> to vector<1x1x128xf32>
    %36 = vector.shape_cast %35 : vector<1x1x128xf32> to vector<1x1x128xf32>
    %37 = vector.broadcast %36 : vector<1x1x128xf32> to vector<1x8x128xf32>
    %38 = vector.extract_strided_slice %2 {offsets = [7, 0], sizes = [1, 128], strides = [1, 1]} : vector<27x128xf32> to vector<1x128xf32>
    %39 = vector.shape_cast %38 : vector<1x128xf32> to vector<128xf32>
    %40 = vector.shape_cast %39 : vector<128xf32> to vector<1x1x128xf32>
    %41 = vector.shape_cast %40 : vector<1x1x128xf32> to vector<1x1x128xf32>
    %42 = vector.broadcast %41 : vector<1x1x128xf32> to vector<1x8x128xf32>
    %43 = vector.extract_strided_slice %2 {offsets = [8, 0], sizes = [1, 128], strides = [1, 1]} : vector<27x128xf32> to vector<1x128xf32>
    %44 = vector.shape_cast %43 : vector<1x128xf32> to vector<128xf32>
    %45 = vector.shape_cast %44 : vector<128xf32> to vector<1x1x128xf32>
    %46 = vector.shape_cast %45 : vector<1x1x128xf32> to vector<1x1x128xf32>
    %47 = vector.broadcast %46 : vector<1x1x128xf32> to vector<1x8x128xf32>
    %48 = vector.extract_strided_slice %2 {offsets = [9, 0], sizes = [1, 128], strides = [1, 1]} : vector<27x128xf32> to vector<1x128xf32>
    %49 = vector.shape_cast %48 : vector<1x128xf32> to vector<128xf32>
    %50 = vector.shape_cast %49 : vector<128xf32> to vector<1x1x128xf32>
    %51 = vector.shape_cast %50 : vector<1x1x128xf32> to vector<1x1x128xf32>
    %52 = vector.broadcast %51 : vector<1x1x128xf32> to vector<1x8x128xf32>
    %53 = vector.extract_strided_slice %2 {offsets = [10, 0], sizes = [1, 128], strides = [1, 1]} : vector<27x128xf32> to vector<1x128xf32>
    %54 = vector.shape_cast %53 : vector<1x128xf32> to vector<128xf32>
    %55 = vector.shape_cast %54 : vector<128xf32> to vector<1x1x128xf32>
    %56 = vector.shape_cast %55 : vector<1x1x128xf32> to vector<1x1x128xf32>
    %57 = vector.broadcast %56 : vector<1x1x128xf32> to vector<1x8x128xf32>
    %58 = vector.extract_strided_slice %2 {offsets = [11, 0], sizes = [1, 128], strides = [1, 1]} : vector<27x128xf32> to vector<1x128xf32>
    %59 = vector.shape_cast %58 : vector<1x128xf32> to vector<128xf32>
    %60 = vector.shape_cast %59 : vector<128xf32> to vector<1x1x128xf32>
    %61 = vector.shape_cast %60 : vector<1x1x128xf32> to vector<1x1x128xf32>
    %62 = vector.broadcast %61 : vector<1x1x128xf32> to vector<1x8x128xf32>
    %63 = vector.extract_strided_slice %2 {offsets = [12, 0], sizes = [1, 128], strides = [1, 1]} : vector<27x128xf32> to vector<1x128xf32>
    %64 = vector.shape_cast %63 : vector<1x128xf32> to vector<128xf32>
    %65 = vector.shape_cast %64 : vector<128xf32> to vector<1x1x128xf32>
    %66 = vector.shape_cast %65 : vector<1x1x128xf32> to vector<1x1x128xf32>
    %67 = vector.broadcast %66 : vector<1x1x128xf32> to vector<1x8x128xf32>
    %68 = vector.extract_strided_slice %2 {offsets = [13, 0], sizes = [1, 128], strides = [1, 1]} : vector<27x128xf32> to vector<1x128xf32>
    %69 = vector.shape_cast %68 : vector<1x128xf32> to vector<128xf32>
    %70 = vector.shape_cast %69 : vector<128xf32> to vector<1x1x128xf32>
    %71 = vector.shape_cast %70 : vector<1x1x128xf32> to vector<1x1x128xf32>
    %72 = vector.broadcast %71 : vector<1x1x128xf32> to vector<1x8x128xf32>
    %73 = vector.extract_strided_slice %2 {offsets = [14, 0], sizes = [1, 128], strides = [1, 1]} : vector<27x128xf32> to vector<1x128xf32>
    %74 = vector.shape_cast %73 : vector<1x128xf32> to vector<128xf32>
    %75 = vector.shape_cast %74 : vector<128xf32> to vector<1x1x128xf32>
    %76 = vector.shape_cast %75 : vector<1x1x128xf32> to vector<1x1x128xf32>
    %77 = vector.broadcast %76 : vector<1x1x128xf32> to vector<1x8x128xf32>
    %78 = vector.extract_strided_slice %2 {offsets = [15, 0], sizes = [1, 128], strides = [1, 1]} : vector<27x128xf32> to vector<1x128xf32>
    %79 = vector.shape_cast %78 : vector<1x128xf32> to vector<128xf32>
    %80 = vector.shape_cast %79 : vector<128xf32> to vector<1x1x128xf32>
    %81 = vector.shape_cast %80 : vector<1x1x128xf32> to vector<1x1x128xf32>
    %82 = vector.broadcast %81 : vector<1x1x128xf32> to vector<1x8x128xf32>
    %83 = vector.extract_strided_slice %2 {offsets = [16, 0], sizes = [1, 128], strides = [1, 1]} : vector<27x128xf32> to vector<1x128xf32>
    %84 = vector.shape_cast %83 : vector<1x128xf32> to vector<128xf32>
    %85 = vector.shape_cast %84 : vector<128xf32> to vector<1x1x128xf32>
    %86 = vector.shape_cast %85 : vector<1x1x128xf32> to vector<1x1x128xf32>
    %87 = vector.broadcast %86 : vector<1x1x128xf32> to vector<1x8x128xf32>
    %88 = vector.extract_strided_slice %2 {offsets = [17, 0], sizes = [1, 128], strides = [1, 1]} : vector<27x128xf32> to vector<1x128xf32>
    %89 = vector.shape_cast %88 : vector<1x128xf32> to vector<128xf32>
    %90 = vector.shape_cast %89 : vector<128xf32> to vector<1x1x128xf32>
    %91 = vector.shape_cast %90 : vector<1x1x128xf32> to vector<1x1x128xf32>
    %92 = vector.broadcast %91 : vector<1x1x128xf32> to vector<1x8x128xf32>
    %93 = vector.extract_strided_slice %2 {offsets = [18, 0], sizes = [1, 128], strides = [1, 1]} : vector<27x128xf32> to vector<1x128xf32>
    %94 = vector.shape_cast %93 : vector<1x128xf32> to vector<128xf32>
    %95 = vector.shape_cast %94 : vector<128xf32> to vector<1x1x128xf32>
    %96 = vector.shape_cast %95 : vector<1x1x128xf32> to vector<1x1x128xf32>
    %97 = vector.broadcast %96 : vector<1x1x128xf32> to vector<1x8x128xf32>
    %98 = vector.extract_strided_slice %2 {offsets = [19, 0], sizes = [1, 128], strides = [1, 1]} : vector<27x128xf32> to vector<1x128xf32>
    %99 = vector.shape_cast %98 : vector<1x128xf32> to vector<128xf32>
    %100 = vector.shape_cast %99 : vector<128xf32> to vector<1x1x128xf32>
    %101 = vector.shape_cast %100 : vector<1x1x128xf32> to vector<1x1x128xf32>
    %102 = vector.broadcast %101 : vector<1x1x128xf32> to vector<1x8x128xf32>
    %103 = vector.extract_strided_slice %2 {offsets = [20, 0], sizes = [1, 128], strides = [1, 1]} : vector<27x128xf32> to vector<1x128xf32>
    %104 = vector.shape_cast %103 : vector<1x128xf32> to vector<128xf32>
    %105 = vector.shape_cast %104 : vector<128xf32> to vector<1x1x128xf32>
    %106 = vector.shape_cast %105 : vector<1x1x128xf32> to vector<1x1x128xf32>
    %107 = vector.broadcast %106 : vector<1x1x128xf32> to vector<1x8x128xf32>
    %108 = vector.extract_strided_slice %2 {offsets = [21, 0], sizes = [1, 128], strides = [1, 1]} : vector<27x128xf32> to vector<1x128xf32>
    %109 = vector.shape_cast %108 : vector<1x128xf32> to vector<128xf32>
    %110 = vector.shape_cast %109 : vector<128xf32> to vector<1x1x128xf32>
    %111 = vector.shape_cast %110 : vector<1x1x128xf32> to vector<1x1x128xf32>
    %112 = vector.broadcast %111 : vector<1x1x128xf32> to vector<1x8x128xf32>
    %113 = vector.extract_strided_slice %2 {offsets = [22, 0], sizes = [1, 128], strides = [1, 1]} : vector<27x128xf32> to vector<1x128xf32>
    %114 = vector.shape_cast %113 : vector<1x128xf32> to vector<128xf32>
    %115 = vector.shape_cast %114 : vector<128xf32> to vector<1x1x128xf32>
    %116 = vector.shape_cast %115 : vector<1x1x128xf32> to vector<1x1x128xf32>
    %117 = vector.broadcast %116 : vector<1x1x128xf32> to vector<1x8x128xf32>
    %118 = vector.extract_strided_slice %2 {offsets = [23, 0], sizes = [1, 128], strides = [1, 1]} : vector<27x128xf32> to vector<1x128xf32>
    %119 = vector.shape_cast %118 : vector<1x128xf32> to vector<128xf32>
    %120 = vector.shape_cast %119 : vector<128xf32> to vector<1x1x128xf32>
    %121 = vector.shape_cast %120 : vector<1x1x128xf32> to vector<1x1x128xf32>
    %122 = vector.broadcast %121 : vector<1x1x128xf32> to vector<1x8x128xf32>
    %123 = vector.extract_strided_slice %2 {offsets = [24, 0], sizes = [1, 128], strides = [1, 1]} : vector<27x128xf32> to vector<1x128xf32>
    %124 = vector.shape_cast %123 : vector<1x128xf32> to vector<128xf32>
    %125 = vector.shape_cast %124 : vector<128xf32> to vector<1x1x128xf32>
    %126 = vector.shape_cast %125 : vector<1x1x128xf32> to vector<1x1x128xf32>
    %127 = vector.broadcast %126 : vector<1x1x128xf32> to vector<1x8x128xf32>
    %128 = vector.extract_strided_slice %2 {offsets = [25, 0], sizes = [1, 128], strides = [1, 1]} : vector<27x128xf32> to vector<1x128xf32>
    %129 = vector.shape_cast %128 : vector<1x128xf32> to vector<128xf32>
    %130 = vector.shape_cast %129 : vector<128xf32> to vector<1x1x128xf32>
    %131 = vector.shape_cast %130 : vector<1x1x128xf32> to vector<1x1x128xf32>
    %132 = vector.broadcast %131 : vector<1x1x128xf32> to vector<1x8x128xf32>
    %133 = vector.extract_strided_slice %2 {offsets = [26, 0], sizes = [1, 128], strides = [1, 1]} : vector<27x128xf32> to vector<1x128xf32>
    %134 = vector.shape_cast %133 : vector<1x128xf32> to vector<128xf32>
    %135 = vector.shape_cast %134 : vector<128xf32> to vector<1x1x128xf32>
    %136 = vector.shape_cast %135 : vector<1x1x128xf32> to vector<1x1x128xf32>
    %137 = vector.broadcast %136 : vector<1x1x128xf32> to vector<1x8x128xf32>
    %c0_i32 = arith.constant 0 : i32
    %c8_i32_1 = arith.constant 8 : i32
    %138 = arith.addi %c0_i32, %c8_i32_1 : i32
    %c1_i32 = arith.constant 1 : i32
    scf.for %arg5 = %c0_i32 to %138 step %c1_i32  : i32 {
      %c1_i32_3 = arith.constant 1 : i32
      %139 = arith.muli %arg5, %c1_i32_3 : i32
      %140 = arith.addi %1, %139 : i32
      %c0_i32_4 = arith.constant 0 : i32
      %141 = arith.addi %140, %c0_i32_4 : i32
      %c0_5 = arith.constant 0 : index
      %142 = arith.index_cast %141 : i32 to index
      %c0_6 = arith.constant 0 : index
      %c0_7 = arith.constant 0 : index
      %c0_8 = arith.constant 0 : index
      %143 = vector.load %arg2[%c0_5, %142, %c0_6, %c0_7, %c0_8] : memref<1x10x10x10x128xf32, #tpu.memory_space<vmem>>, vector<1x1x8x8x128xf32>
      %144 = vector.shape_cast %143 : vector<1x1x8x8x128xf32> to vector<8x8x128xf32>
      %145 = vector.broadcast %7 : vector<1x8x128xf32> to vector<8x8x128xf32>
      %146 = arith.mulf %144, %145 : vector<8x8x128xf32>
      %c0_i32_9 = arith.constant 0 : i32
      %147 = arith.addi %140, %c0_i32_9 : i32
      %c0_10 = arith.constant 0 : index
      %148 = arith.index_cast %147 : i32 to index
      %c0_11 = arith.constant 0 : index
      %c1 = arith.constant 1 : index
      %c0_12 = arith.constant 0 : index
      %149 = vector.load %arg2[%c0_10, %148, %c0_11, %c1, %c0_12] : memref<1x10x10x10x128xf32, #tpu.memory_space<vmem>>, vector<1x1x8x8x128xf32>
      %150 = vector.shape_cast %149 : vector<1x1x8x8x128xf32> to vector<8x8x128xf32>
      %151 = vector.broadcast %12 : vector<1x8x128xf32> to vector<8x8x128xf32>
      %152 = arith.mulf %150, %151 : vector<8x8x128xf32>
      %153 = arith.addf %146, %152 : vector<8x8x128xf32>
      %c0_i32_13 = arith.constant 0 : i32
      %154 = arith.addi %140, %c0_i32_13 : i32
      %c0_14 = arith.constant 0 : index
      %155 = arith.index_cast %154 : i32 to index
      %c0_15 = arith.constant 0 : index
      %c2 = arith.constant 2 : index
      %c0_16 = arith.constant 0 : index
      %156 = vector.load %arg2[%c0_14, %155, %c0_15, %c2, %c0_16] : memref<1x10x10x10x128xf32, #tpu.memory_space<vmem>>, vector<1x1x8x8x128xf32>
      %157 = vector.shape_cast %156 : vector<1x1x8x8x128xf32> to vector<8x8x128xf32>
      %158 = vector.broadcast %17 : vector<1x8x128xf32> to vector<8x8x128xf32>
      %159 = arith.mulf %157, %158 : vector<8x8x128xf32>
      %160 = arith.addf %153, %159 : vector<8x8x128xf32>
      %c0_i32_17 = arith.constant 0 : i32
      %161 = arith.addi %140, %c0_i32_17 : i32
      %c0_18 = arith.constant 0 : index
      %162 = arith.index_cast %161 : i32 to index
      %c1_19 = arith.constant 1 : index
      %c0_20 = arith.constant 0 : index
      %c0_21 = arith.constant 0 : index
      %163 = vector.load %arg2[%c0_18, %162, %c1_19, %c0_20, %c0_21] : memref<1x10x10x10x128xf32, #tpu.memory_space<vmem>>, vector<1x1x8x8x128xf32>
      %164 = vector.shape_cast %163 : vector<1x1x8x8x128xf32> to vector<8x8x128xf32>
      %165 = vector.broadcast %22 : vector<1x8x128xf32> to vector<8x8x128xf32>
      %166 = arith.mulf %164, %165 : vector<8x8x128xf32>
      %167 = arith.addf %160, %166 : vector<8x8x128xf32>
      %c0_i32_22 = arith.constant 0 : i32
      %168 = arith.addi %140, %c0_i32_22 : i32
      %c0_23 = arith.constant 0 : index
      %169 = arith.index_cast %168 : i32 to index
      %c1_24 = arith.constant 1 : index
      %c1_25 = arith.constant 1 : index
      %c0_26 = arith.constant 0 : index
      %170 = vector.load %arg2[%c0_23, %169, %c1_24, %c1_25, %c0_26] : memref<1x10x10x10x128xf32, #tpu.memory_space<vmem>>, vector<1x1x8x8x128xf32>
      %171 = vector.shape_cast %170 : vector<1x1x8x8x128xf32> to vector<8x8x128xf32>
      %172 = vector.broadcast %27 : vector<1x8x128xf32> to vector<8x8x128xf32>
      %173 = arith.mulf %171, %172 : vector<8x8x128xf32>
      %174 = arith.addf %167, %173 : vector<8x8x128xf32>
      %c0_i32_27 = arith.constant 0 : i32
      %175 = arith.addi %140, %c0_i32_27 : i32
      %c0_28 = arith.constant 0 : index
      %176 = arith.index_cast %175 : i32 to index
      %c1_29 = arith.constant 1 : index
      %c2_30 = arith.constant 2 : index
      %c0_31 = arith.constant 0 : index
      %177 = vector.load %arg2[%c0_28, %176, %c1_29, %c2_30, %c0_31] : memref<1x10x10x10x128xf32, #tpu.memory_space<vmem>>, vector<1x1x8x8x128xf32>
      %178 = vector.shape_cast %177 : vector<1x1x8x8x128xf32> to vector<8x8x128xf32>
      %179 = vector.broadcast %32 : vector<1x8x128xf32> to vector<8x8x128xf32>
      %180 = arith.mulf %178, %179 : vector<8x8x128xf32>
      %181 = arith.addf %174, %180 : vector<8x8x128xf32>
      %c0_i32_32 = arith.constant 0 : i32
      %182 = arith.addi %140, %c0_i32_32 : i32
      %c0_33 = arith.constant 0 : index
      %183 = arith.index_cast %182 : i32 to index
      %c2_34 = arith.constant 2 : index
      %c0_35 = arith.constant 0 : index
      %c0_36 = arith.constant 0 : index
      %184 = vector.load %arg2[%c0_33, %183, %c2_34, %c0_35, %c0_36] : memref<1x10x10x10x128xf32, #tpu.memory_space<vmem>>, vector<1x1x8x8x128xf32>
      %185 = vector.shape_cast %184 : vector<1x1x8x8x128xf32> to vector<8x8x128xf32>
      %186 = vector.broadcast %37 : vector<1x8x128xf32> to vector<8x8x128xf32>
      %187 = arith.mulf %185, %186 : vector<8x8x128xf32>
      %188 = arith.addf %181, %187 : vector<8x8x128xf32>
      %c0_i32_37 = arith.constant 0 : i32
      %189 = arith.addi %140, %c0_i32_37 : i32
      %c0_38 = arith.constant 0 : index
      %190 = arith.index_cast %189 : i32 to index
      %c2_39 = arith.constant 2 : index
      %c1_40 = arith.constant 1 : index
      %c0_41 = arith.constant 0 : index
      %191 = vector.load %arg2[%c0_38, %190, %c2_39, %c1_40, %c0_41] : memref<1x10x10x10x128xf32, #tpu.memory_space<vmem>>, vector<1x1x8x8x128xf32>
      %192 = vector.shape_cast %191 : vector<1x1x8x8x128xf32> to vector<8x8x128xf32>
      %193 = vector.broadcast %42 : vector<1x8x128xf32> to vector<8x8x128xf32>
      %194 = arith.mulf %192, %193 : vector<8x8x128xf32>
      %195 = arith.addf %188, %194 : vector<8x8x128xf32>
      %c0_i32_42 = arith.constant 0 : i32
      %196 = arith.addi %140, %c0_i32_42 : i32
      %c0_43 = arith.constant 0 : index
      %197 = arith.index_cast %196 : i32 to index
      %c2_44 = arith.constant 2 : index
      %c2_45 = arith.constant 2 : index
      %c0_46 = arith.constant 0 : index
      %198 = vector.load %arg2[%c0_43, %197, %c2_44, %c2_45, %c0_46] : memref<1x10x10x10x128xf32, #tpu.memory_space<vmem>>, vector<1x1x8x8x128xf32>
      %199 = vector.shape_cast %198 : vector<1x1x8x8x128xf32> to vector<8x8x128xf32>
      %200 = vector.broadcast %47 : vector<1x8x128xf32> to vector<8x8x128xf32>
      %201 = arith.mulf %199, %200 : vector<8x8x128xf32>
      %202 = arith.addf %195, %201 : vector<8x8x128xf32>
      %c1_i32_47 = arith.constant 1 : i32
      %203 = arith.addi %140, %c1_i32_47 : i32
      %c0_48 = arith.constant 0 : index
      %204 = arith.index_cast %203 : i32 to index
      %c0_49 = arith.constant 0 : index
      %c0_50 = arith.constant 0 : index
      %c0_51 = arith.constant 0 : index
      %205 = vector.load %arg2[%c0_48, %204, %c0_49, %c0_50, %c0_51] : memref<1x10x10x10x128xf32, #tpu.memory_space<vmem>>, vector<1x1x8x8x128xf32>
      %206 = vector.shape_cast %205 : vector<1x1x8x8x128xf32> to vector<8x8x128xf32>
      %207 = vector.broadcast %52 : vector<1x8x128xf32> to vector<8x8x128xf32>
      %208 = arith.mulf %206, %207 : vector<8x8x128xf32>
      %209 = arith.addf %202, %208 : vector<8x8x128xf32>
      %c1_i32_52 = arith.constant 1 : i32
      %210 = arith.addi %140, %c1_i32_52 : i32
      %c0_53 = arith.constant 0 : index
      %211 = arith.index_cast %210 : i32 to index
      %c0_54 = arith.constant 0 : index
      %c1_55 = arith.constant 1 : index
      %c0_56 = arith.constant 0 : index
      %212 = vector.load %arg2[%c0_53, %211, %c0_54, %c1_55, %c0_56] : memref<1x10x10x10x128xf32, #tpu.memory_space<vmem>>, vector<1x1x8x8x128xf32>
      %213 = vector.shape_cast %212 : vector<1x1x8x8x128xf32> to vector<8x8x128xf32>
      %214 = vector.broadcast %57 : vector<1x8x128xf32> to vector<8x8x128xf32>
      %215 = arith.mulf %213, %214 : vector<8x8x128xf32>
      %216 = arith.addf %209, %215 : vector<8x8x128xf32>
      %c1_i32_57 = arith.constant 1 : i32
      %217 = arith.addi %140, %c1_i32_57 : i32
      %c0_58 = arith.constant 0 : index
      %218 = arith.index_cast %217 : i32 to index
      %c0_59 = arith.constant 0 : index
      %c2_60 = arith.constant 2 : index
      %c0_61 = arith.constant 0 : index
      %219 = vector.load %arg2[%c0_58, %218, %c0_59, %c2_60, %c0_61] : memref<1x10x10x10x128xf32, #tpu.memory_space<vmem>>, vector<1x1x8x8x128xf32>
      %220 = vector.shape_cast %219 : vector<1x1x8x8x128xf32> to vector<8x8x128xf32>
      %221 = vector.broadcast %62 : vector<1x8x128xf32> to vector<8x8x128xf32>
      %222 = arith.mulf %220, %221 : vector<8x8x128xf32>
      %223 = arith.addf %216, %222 : vector<8x8x128xf32>
      %c1_i32_62 = arith.constant 1 : i32
      %224 = arith.addi %140, %c1_i32_62 : i32
      %c0_63 = arith.constant 0 : index
      %225 = arith.index_cast %224 : i32 to index
      %c1_64 = arith.constant 1 : index
      %c0_65 = arith.constant 0 : index
      %c0_66 = arith.constant 0 : index
      %226 = vector.load %arg2[%c0_63, %225, %c1_64, %c0_65, %c0_66] : memref<1x10x10x10x128xf32, #tpu.memory_space<vmem>>, vector<1x1x8x8x128xf32>
      %227 = vector.shape_cast %226 : vector<1x1x8x8x128xf32> to vector<8x8x128xf32>
      %228 = vector.broadcast %67 : vector<1x8x128xf32> to vector<8x8x128xf32>
      %229 = arith.mulf %227, %228 : vector<8x8x128xf32>
      %230 = arith.addf %223, %229 : vector<8x8x128xf32>
      %c1_i32_67 = arith.constant 1 : i32
      %231 = arith.addi %140, %c1_i32_67 : i32
      %c0_68 = arith.constant 0 : index
      %232 = arith.index_cast %231 : i32 to index
      %c1_69 = arith.constant 1 : index
      %c1_70 = arith.constant 1 : index
      %c0_71 = arith.constant 0 : index
      %233 = vector.load %arg2[%c0_68, %232, %c1_69, %c1_70, %c0_71] : memref<1x10x10x10x128xf32, #tpu.memory_space<vmem>>, vector<1x1x8x8x128xf32>
      %234 = vector.shape_cast %233 : vector<1x1x8x8x128xf32> to vector<8x8x128xf32>
      %235 = vector.broadcast %72 : vector<1x8x128xf32> to vector<8x8x128xf32>
      %236 = arith.mulf %234, %235 : vector<8x8x128xf32>
      %237 = arith.addf %230, %236 : vector<8x8x128xf32>
      %c1_i32_72 = arith.constant 1 : i32
      %238 = arith.addi %140, %c1_i32_72 : i32
      %c0_73 = arith.constant 0 : index
      %239 = arith.index_cast %238 : i32 to index
      %c1_74 = arith.constant 1 : index
      %c2_75 = arith.constant 2 : index
      %c0_76 = arith.constant 0 : index
      %240 = vector.load %arg2[%c0_73, %239, %c1_74, %c2_75, %c0_76] : memref<1x10x10x10x128xf32, #tpu.memory_space<vmem>>, vector<1x1x8x8x128xf32>
      %241 = vector.shape_cast %240 : vector<1x1x8x8x128xf32> to vector<8x8x128xf32>
      %242 = vector.broadcast %77 : vector<1x8x128xf32> to vector<8x8x128xf32>
      %243 = arith.mulf %241, %242 : vector<8x8x128xf32>
      %244 = arith.addf %237, %243 : vector<8x8x128xf32>
      %c1_i32_77 = arith.constant 1 : i32
      %245 = arith.addi %140, %c1_i32_77 : i32
      %c0_78 = arith.constant 0 : index
      %246 = arith.index_cast %245 : i32 to index
      %c2_79 = arith.constant 2 : index
      %c0_80 = arith.constant 0 : index
      %c0_81 = arith.constant 0 : index
      %247 = vector.load %arg2[%c0_78, %246, %c2_79, %c0_80, %c0_81] : memref<1x10x10x10x128xf32, #tpu.memory_space<vmem>>, vector<1x1x8x8x128xf32>
      %248 = vector.shape_cast %247 : vector<1x1x8x8x128xf32> to vector<8x8x128xf32>
      %249 = vector.broadcast %82 : vector<1x8x128xf32> to vector<8x8x128xf32>
      %250 = arith.mulf %248, %249 : vector<8x8x128xf32>
      %251 = arith.addf %244, %250 : vector<8x8x128xf32>
      %c1_i32_82 = arith.constant 1 : i32
      %252 = arith.addi %140, %c1_i32_82 : i32
      %c0_83 = arith.constant 0 : index
      %253 = arith.index_cast %252 : i32 to index
      %c2_84 = arith.constant 2 : index
      %c1_85 = arith.constant 1 : index
      %c0_86 = arith.constant 0 : index
      %254 = vector.load %arg2[%c0_83, %253, %c2_84, %c1_85, %c0_86] : memref<1x10x10x10x128xf32, #tpu.memory_space<vmem>>, vector<1x1x8x8x128xf32>
      %255 = vector.shape_cast %254 : vector<1x1x8x8x128xf32> to vector<8x8x128xf32>
      %256 = vector.broadcast %87 : vector<1x8x128xf32> to vector<8x8x128xf32>
      %257 = arith.mulf %255, %256 : vector<8x8x128xf32>
      %258 = arith.addf %251, %257 : vector<8x8x128xf32>
      %c1_i32_87 = arith.constant 1 : i32
      %259 = arith.addi %140, %c1_i32_87 : i32
      %c0_88 = arith.constant 0 : index
      %260 = arith.index_cast %259 : i32 to index
      %c2_89 = arith.constant 2 : index
      %c2_90 = arith.constant 2 : index
      %c0_91 = arith.constant 0 : index
      %261 = vector.load %arg2[%c0_88, %260, %c2_89, %c2_90, %c0_91] : memref<1x10x10x10x128xf32, #tpu.memory_space<vmem>>, vector<1x1x8x8x128xf32>
      %262 = vector.shape_cast %261 : vector<1x1x8x8x128xf32> to vector<8x8x128xf32>
      %263 = vector.broadcast %92 : vector<1x8x128xf32> to vector<8x8x128xf32>
      %264 = arith.mulf %262, %263 : vector<8x8x128xf32>
      %265 = arith.addf %258, %264 : vector<8x8x128xf32>
      %c2_i32 = arith.constant 2 : i32
      %266 = arith.addi %140, %c2_i32 : i32
      %c0_92 = arith.constant 0 : index
      %267 = arith.index_cast %266 : i32 to index
      %c0_93 = arith.constant 0 : index
      %c0_94 = arith.constant 0 : index
      %c0_95 = arith.constant 0 : index
      %268 = vector.load %arg2[%c0_92, %267, %c0_93, %c0_94, %c0_95] : memref<1x10x10x10x128xf32, #tpu.memory_space<vmem>>, vector<1x1x8x8x128xf32>
      %269 = vector.shape_cast %268 : vector<1x1x8x8x128xf32> to vector<8x8x128xf32>
      %270 = vector.broadcast %97 : vector<1x8x128xf32> to vector<8x8x128xf32>
      %271 = arith.mulf %269, %270 : vector<8x8x128xf32>
      %272 = arith.addf %265, %271 : vector<8x8x128xf32>
      %c2_i32_96 = arith.constant 2 : i32
      %273 = arith.addi %140, %c2_i32_96 : i32
      %c0_97 = arith.constant 0 : index
      %274 = arith.index_cast %273 : i32 to index
      %c0_98 = arith.constant 0 : index
      %c1_99 = arith.constant 1 : index
      %c0_100 = arith.constant 0 : index
      %275 = vector.load %arg2[%c0_97, %274, %c0_98, %c1_99, %c0_100] : memref<1x10x10x10x128xf32, #tpu.memory_space<vmem>>, vector<1x1x8x8x128xf32>
      %276 = vector.shape_cast %275 : vector<1x1x8x8x128xf32> to vector<8x8x128xf32>
      %277 = vector.broadcast %102 : vector<1x8x128xf32> to vector<8x8x128xf32>
      %278 = arith.mulf %276, %277 : vector<8x8x128xf32>
      %279 = arith.addf %272, %278 : vector<8x8x128xf32>
      %c2_i32_101 = arith.constant 2 : i32
      %280 = arith.addi %140, %c2_i32_101 : i32
      %c0_102 = arith.constant 0 : index
      %281 = arith.index_cast %280 : i32 to index
      %c0_103 = arith.constant 0 : index
      %c2_104 = arith.constant 2 : index
      %c0_105 = arith.constant 0 : index
      %282 = vector.load %arg2[%c0_102, %281, %c0_103, %c2_104, %c0_105] : memref<1x10x10x10x128xf32, #tpu.memory_space<vmem>>, vector<1x1x8x8x128xf32>
      %283 = vector.shape_cast %282 : vector<1x1x8x8x128xf32> to vector<8x8x128xf32>
      %284 = vector.broadcast %107 : vector<1x8x128xf32> to vector<8x8x128xf32>
      %285 = arith.mulf %283, %284 : vector<8x8x128xf32>
      %286 = arith.addf %279, %285 : vector<8x8x128xf32>
      %c2_i32_106 = arith.constant 2 : i32
      %287 = arith.addi %140, %c2_i32_106 : i32
      %c0_107 = arith.constant 0 : index
      %288 = arith.index_cast %287 : i32 to index
      %c1_108 = arith.constant 1 : index
      %c0_109 = arith.constant 0 : index
      %c0_110 = arith.constant 0 : index
      %289 = vector.load %arg2[%c0_107, %288, %c1_108, %c0_109, %c0_110] : memref<1x10x10x10x128xf32, #tpu.memory_space<vmem>>, vector<1x1x8x8x128xf32>
      %290 = vector.shape_cast %289 : vector<1x1x8x8x128xf32> to vector<8x8x128xf32>
      %291 = vector.broadcast %112 : vector<1x8x128xf32> to vector<8x8x128xf32>
      %292 = arith.mulf %290, %291 : vector<8x8x128xf32>
      %293 = arith.addf %286, %292 : vector<8x8x128xf32>
      %c2_i32_111 = arith.constant 2 : i32
      %294 = arith.addi %140, %c2_i32_111 : i32
      %c0_112 = arith.constant 0 : index
      %295 = arith.index_cast %294 : i32 to index
      %c1_113 = arith.constant 1 : index
      %c1_114 = arith.constant 1 : index
      %c0_115 = arith.constant 0 : index
      %296 = vector.load %arg2[%c0_112, %295, %c1_113, %c1_114, %c0_115] : memref<1x10x10x10x128xf32, #tpu.memory_space<vmem>>, vector<1x1x8x8x128xf32>
      %297 = vector.shape_cast %296 : vector<1x1x8x8x128xf32> to vector<8x8x128xf32>
      %298 = vector.broadcast %117 : vector<1x8x128xf32> to vector<8x8x128xf32>
      %299 = arith.mulf %297, %298 : vector<8x8x128xf32>
      %300 = arith.addf %293, %299 : vector<8x8x128xf32>
      %c2_i32_116 = arith.constant 2 : i32
      %301 = arith.addi %140, %c2_i32_116 : i32
      %c0_117 = arith.constant 0 : index
      %302 = arith.index_cast %301 : i32 to index
      %c1_118 = arith.constant 1 : index
      %c2_119 = arith.constant 2 : index
      %c0_120 = arith.constant 0 : index
      %303 = vector.load %arg2[%c0_117, %302, %c1_118, %c2_119, %c0_120] : memref<1x10x10x10x128xf32, #tpu.memory_space<vmem>>, vector<1x1x8x8x128xf32>
      %304 = vector.shape_cast %303 : vector<1x1x8x8x128xf32> to vector<8x8x128xf32>
      %305 = vector.broadcast %122 : vector<1x8x128xf32> to vector<8x8x128xf32>
      %306 = arith.mulf %304, %305 : vector<8x8x128xf32>
      %307 = arith.addf %300, %306 : vector<8x8x128xf32>
      %c2_i32_121 = arith.constant 2 : i32
      %308 = arith.addi %140, %c2_i32_121 : i32
      %c0_122 = arith.constant 0 : index
      %309 = arith.index_cast %308 : i32 to index
      %c2_123 = arith.constant 2 : index
      %c0_124 = arith.constant 0 : index
      %c0_125 = arith.constant 0 : index
      %310 = vector.load %arg2[%c0_122, %309, %c2_123, %c0_124, %c0_125] : memref<1x10x10x10x128xf32, #tpu.memory_space<vmem>>, vector<1x1x8x8x128xf32>
      %311 = vector.shape_cast %310 : vector<1x1x8x8x128xf32> to vector<8x8x128xf32>
      %312 = vector.broadcast %127 : vector<1x8x128xf32> to vector<8x8x128xf32>
      %313 = arith.mulf %311, %312 : vector<8x8x128xf32>
      %314 = arith.addf %307, %313 : vector<8x8x128xf32>
      %c2_i32_126 = arith.constant 2 : i32
      %315 = arith.addi %140, %c2_i32_126 : i32
      %c0_127 = arith.constant 0 : index
      %316 = arith.index_cast %315 : i32 to index
      %c2_128 = arith.constant 2 : index
      %c1_129 = arith.constant 1 : index
      %c0_130 = arith.constant 0 : index
      %317 = vector.load %arg2[%c0_127, %316, %c2_128, %c1_129, %c0_130] : memref<1x10x10x10x128xf32, #tpu.memory_space<vmem>>, vector<1x1x8x8x128xf32>
      %318 = vector.shape_cast %317 : vector<1x1x8x8x128xf32> to vector<8x8x128xf32>
      %319 = vector.broadcast %132 : vector<1x8x128xf32> to vector<8x8x128xf32>
      %320 = arith.mulf %318, %319 : vector<8x8x128xf32>
      %321 = arith.addf %314, %320 : vector<8x8x128xf32>
      %c2_i32_131 = arith.constant 2 : i32
      %322 = arith.addi %140, %c2_i32_131 : i32
      %c0_132 = arith.constant 0 : index
      %323 = arith.index_cast %322 : i32 to index
      %c2_133 = arith.constant 2 : index
      %c2_134 = arith.constant 2 : index
      %c0_135 = arith.constant 0 : index
      %324 = vector.load %arg2[%c0_132, %323, %c2_133, %c2_134, %c0_135] : memref<1x10x10x10x128xf32, #tpu.memory_space<vmem>>, vector<1x1x8x8x128xf32>
      %325 = vector.shape_cast %324 : vector<1x1x8x8x128xf32> to vector<8x8x128xf32>
      %326 = vector.broadcast %137 : vector<1x8x128xf32> to vector<8x8x128xf32>
      %327 = arith.mulf %325, %326 : vector<8x8x128xf32>
      %328 = arith.addf %321, %327 : vector<8x8x128xf32>
      %c0_136 = arith.constant 0 : index
      %329 = arith.index_cast %arg5 : i32 to index
      %c0_137 = arith.constant 0 : index
      %c0_138 = arith.constant 0 : index
      %c0_139 = arith.constant 0 : index
      %330 = vector.load %arg4[%c0_136, %329, %c0_137, %c0_138, %c0_139] : memref<1x8x8x8x128xf32, #tpu.memory_space<vmem>>, vector<1x1x8x8x128xf32>
      %331 = vector.shape_cast %330 : vector<1x1x8x8x128xf32> to vector<8x8x128xf32>
      %332 = vector.shape_cast %328 : vector<8x8x128xf32> to vector<1x1x8x8x128xf32>
      tpu.vector_store %arg4[%c0_136, %329, %c0_137, %c0_138, %c0_139], %332 {strides = array<i32>} : memref<1x8x8x8x128xf32, #tpu.memory_space<vmem>>, vector<1x1x8x8x128xf32>,
    }
    %c8_i32_2 = arith.constant 8 : i32
    return
  }
  func.func @transform_0(%arg0: i32, %arg1: i32) -> (i32, i32, i32, i32, i32) {
    %c0_i32 = arith.constant 0 : i32
    %c0_i32_0 = arith.constant 0 : i32
    %c0_i32_1 = arith.constant 0 : i32
    %c0_i32_2 = arith.constant 0 : i32
    %c0_i32_3 = arith.constant 0 : i32
    return %arg0, %c0_i32, %c0_i32_0, %c0_i32_1, %c0_i32_2 : i32, i32, i32, i32, i32
  }
  func.func @transform_1(%arg0: i32, %arg1: i32) -> (i32, i32) {
    %c0_i32 = arith.constant 0 : i32
    %c0_i32_0 = arith.constant 0 : i32
    %c0_i32_1 = arith.constant 0 : i32
    return %c0_i32, %c0_i32_0 : i32, i32
  }
  func.func @transform_2(%arg0: i32, %arg1: i32) -> (i32, i32, i32, i32, i32) {
    %c0_i32 = arith.constant 0 : i32
    %c0_i32_0 = arith.constant 0 : i32
    %c0_i32_1 = arith.constant 0 : i32
    %c0_i32_2 = arith.constant 0 : i32
    return %arg0, %arg1, %c0_i32, %c0_i32_0, %c0_i32_1 : i32, i32, i32, i32, i32
  }
}

</mosaic_0001>

<llo_original>
// kernel: tpu_custom_call.1
$region0: #{tpu_custom_call.1}
  #allocation0 [shape = 'u32[]', space=smem, size = 0x4, offset = 0x4, fixed_abs, tag = 'smem constant byte address 0x4 - core index']
  #allocation1 [shape = 'u32[144,128]{1,0:T(1,128)}', space=vmem, size = 0x12000, scoped, tag = 'internal scratch']
  %s0 = inlined_call_operand.vmem [shape: f32[2,10,10,10,128], index: 0, kind: input, shape index: {}]
  %s1 = inlined_call_operand.vmem [shape: f32[27,128], index: 1, kind: input, shape index: {}]
  %s2 = inlined_call_operand.hbm [shape: f32[2,8,8,8,128], index: 2, kind: output, shape index: {}]
  %s3 = sld [smem:[#allocation0]]
  $region48: #{tpu_custom_call.1} parent=0
    _
  %s5 = ssub.s32 1, %s3
  %s6 = scalar_select 0, %s5, %s3
  $region1: #{tpu_custom_call.1} parent=0
    #allocation2 [shape = 'u8[524288]{0}', space=vmem, size = 0x80000, scoped, tag = 'output window, operand 0']
    #allocation3 [shape = 's32[2]{0}', space=sflag, size = 0x8, scoped, tag = 'scoped memory for tpu_custom_call.1']
    %7 = vsyncpa [#allocation3], 0
    %s8 = scalar_lea.sflag [#allocation3], 1
    %9 = vsyncpa %s8, 0
    loop: start=0, step=1, limit=4
    $region2: #{tpu_custom_call.1} parent=1 // loop_pre_header
      _
    $region3: #{tpu_custom_call.1} parent=1 // loop_header
      %s11 = sphi 0, %s15
      %p12 = scmp.ge.s32.totalorder %s11, 4
      %s18 = sphi 0, %s30
      %s19 = sphi 0, %s26
      %s20 = sphi 0, %s18
      %s21 = sphi 0, %s19
      %s22 = sphi 0, %s20
      %s23 = sphi 0, %s21
      %s33 = sphi 0, %s35
      %s36 = sphi 0, %s33
      %s37 = sphi 0, %s36
      %s53 = sphi 0, %s37
      %s57 = sphi 0, %s57
      %s59 = sphi 0, %s57
      %s60 = sphi 0, %s59
      %s74 = sphi 0, %s60
      %s82 = sphi 0, %s84
      %s85 = sphi 0, %s82
      %s86 = sphi 0, %s85
      %s102 = sphi 0, %s86
    $region4: #{tpu_custom_call.1} parent=1 // loop_header_branch
      %14 = sbr.rel (%p12) target = $region8
    $region5: #{tpu_custom_call.1} parent=1 // loop_body
      %s16 = ssub.s32 %s11, 1
      %s17 = ssub.s32 %s11, 2
      %s24 = sadd.s32 1, %s19
      %p25 = scmp.ge.s32.totalorder %s24, 1
      %s26 = scalar_select %p25, 0, %s24
      %s27 = sadd.s32 1, %s18
      %s28 = scalar_select %p25, %s27, %s18
      %p29 = scmp.ge.s32.totalorder %s28, 2
      %s30 = scalar_select %p29, 0, %s28
      %s31 = ssub.s32 %s18, %s30
      %p32 = scmp.eq.s32.totalorder %s31, 0
      %s34 = sadd.s32 %s33, 1
      %s35 = scalar_select %p32, %s33, %s34
      %p38 = pneg %p32
      %p39 = scmp.eq.s32.totalorder %s11, 1
      %p40 = por %p38, %p39
      %p41 = scmp.ne.s32.totalorder %s33, %s36
      %p42 = scmp.eq.s32.totalorder %s11, 0
      %p43 = por %p41, %p42
      %p44 = scmp.ne.s32.totalorder %s33, %s36
      %p45 = scmp.eq.s32.totalorder %s16, 1
      %p46 = por %p44, %p45
      %p47 = scmp.ne.s32.totalorder %s36, %s37
      %p48 = scmp.eq.s32.totalorder %s16, 0
      %p49 = por %p47, %p48
      %p50 = scmp.ne.s32.totalorder %s36, %s37
      %p51 = scmp.eq.s32.totalorder %s17, 1
      %p52 = por %p50, %p51
      %p54 = scmp.ne.s32.totalorder %s37, %s53
      %p55 = scmp.eq.s32.totalorder %s17, 0
      %p56 = por %p54, %p55
      %s58 = sadd.s32 %s57, 1
      %p61 = scmp.eq.s32.totalorder %s11, 1
      %p62 = scmp.ne.s32.totalorder %s57, %s59
      %p63 = scmp.eq.s32.totalorder %s11, 0
      %p64 = por %p62, %p63
      %p65 = scmp.ne.s32.totalorder %s57, %s59
      %p66 = scmp.eq.s32.totalorder %s16, 1
      %p67 = por %p65, %p66
      %p68 = scmp.ne.s32.totalorder %s59, %s60
      %p69 = scmp.eq.s32.totalorder %s16, 0
      %p70 = por %p68, %p69
      %p71 = scmp.ne.s32.totalorder %s59, %s60
      %p72 = scmp.eq.s32.totalorder %s17, 1
      %p73 = por %p71, %p72
      %p75 = scmp.ne.s32.totalorder %s60, %s74
      %p76 = scmp.eq.s32.totalorder %s17, 0
      %p77 = por %p75, %p76
      %s78 = ssub.s32 %s18, %s30
      %s79 = ssub.s32 %s19, %s26
      %s80 = sor.u32 %s78, %s79
      %p81 = scmp.eq.s32.totalorder %s80, 0
      %s83 = sadd.s32 %s82, 1
      %s84 = scalar_select %p81, %s82, %s83
      %p87 = pneg %p81
      %p88 = scmp.eq.s32.totalorder %s11, 1
      %p89 = por %p87, %p88
      %p90 = scmp.ne.s32.totalorder %s82, %s85
      %p91 = scmp.eq.s32.totalorder %s11, 0
      %p92 = por %p90, %p91
      %p93 = scmp.ne.s32.totalorder %s82, %s85
      %p94 = scmp.eq.s32.totalorder %s16, 1
      %p95 = por %p93, %p94
      %p96 = scmp.ne.s32.totalorder %s85, %s86
      %p97 = scmp.eq.s32.totalorder %s16, 0
      %p98 = por %p96, %p97
      %p99 = scmp.ne.s32.totalorder %s85, %s86
      %p100 = scmp.eq.s32.totalorder %s17, 1
      %p101 = por %p99, %p100
      %p103 = scmp.ne.s32.totalorder %s86, %s102
      %p104 = scmp.eq.s32.totalorder %s17, 0
      %p105 = por %p103, %p104
      %p106 = scmp.le.s32.totalorder 1, %s11
      %p107 = scmp.lt.s32.totalorder %s11, 3
      %p108 = pnand %p106, %p107
      %p109 = pneg %p108
      // Predicated region
      $region9: #{tpu_custom_call.1} parent=5 // pred_check
        _
      $region10: #{tpu_custom_call.1} parent=5 // pred_check_branch
        %111 = sbr.rel (%p108) target = $region12
      $region11: #{tpu_custom_call.1} parent=5 // pred_region
        %s112 = ssub.s32 %s11, 1
        // Predicated region
        $region13: #{tpu_custom_call.1} parent=11 // pred_check
          %p113 = pneg %p70
        $region14: #{tpu_custom_call.1} parent=11 // pred_check_branch
          %115 = sbr.rel (%p113) target = $region16
        $region15: #{tpu_custom_call.1} parent=11 // pred_region
          _
        $region16: #{tpu_custom_call.1} parent=11 // pred_fallthru
          _
      $region12: #{tpu_custom_call.1} parent=5 // pred_fallthru
        _
      %p116 = scmp.lt.s32.totalorder %s11, 2
      // Predicated region
      $region17: #{tpu_custom_call.1} parent=5 // pred_check
        %p117 = pneg %p116
      $region18: #{tpu_custom_call.1} parent=5 // pred_check_branch
        %119 = sbr.rel (%p117) target = $region20
      $region19: #{tpu_custom_call.1} parent=5 // pred_region
        // Predicated region
        $region21: #{tpu_custom_call.1} parent=19 // pred_check
          %p120 = pneg %p43
        $region22: #{tpu_custom_call.1} parent=19 // pred_check_branch
          %122 = sbr.rel (%p120) target = $region24
        $region23: #{tpu_custom_call.1} parent=19 // pred_region
          %p123 = scmp.lt.s32.totalorder %s18, 1
          %s124 = scalar_select %p123, %s18, 1
          %s125 = smul.addr %s124, 200
          %s126 = smul.addr %s125, 8
          %s127 = scalar_lea.vmem %s0, %s126
        $region24: #{tpu_custom_call.1} parent=19 // pred_fallthru
          _
      $region20: #{tpu_custom_call.1} parent=5 // pred_fallthru
        _
      %p128 = scmp.le.s32.totalorder 1, %s11
      %p129 = scmp.lt.s32.totalorder %s11, 3
      %p130 = pnand %p128, %p129
      %p131 = pneg %p130
      // Predicated region
      $region25: #{tpu_custom_call.1} parent=5 // pred_check
        _
      $region26: #{tpu_custom_call.1} parent=5 // pred_check_branch
        %133 = sbr.rel (%p130) target = $region28
      $region27: #{tpu_custom_call.1} parent=5 // pred_region
        %s134 = ssub.s32 %s11, 1
        %p135 = scmp.lt.s32.totalorder %s20, 1
        %s136 = scalar_select %p135, %s20, 1
        %s137 = smul.addr %s136, 200
        %s138 = smul.addr %s137, 8
        %s139 = scalar_lea.vmem %s0, %s138
        %p140 = pneg %p49
        %p141 = pneg %p46
        %p142 = pneg %p70
        %p143 = pneg %p67
        %p144 = pneg %p98
        %p145 = pneg %p95
        %s146 = sand.u32 %s85, 1
        %s147 = scalar_lea.sflag [#allocation3], %s146
        %s148 = sand.u32 %s85, 1
        %s149 = smul.addr %s148, 512
        %s150 = scalar_lea.vmem [#allocation2], %s149
        %p151 = scmp.lt.s32.totalorder %s20, 1
        %s152 = scalar_select %p151, %s20, 1
        %s153 = smul.addr %s152, 200
        %s154 = smul.addr %s153, 8
        %s155 = scalar_lea.vmem %s0, %s154
        %s156 = smul.u32 8, %s21
        %s157 = smul.u32 %s21, 8
        %v158 = vld [vmem:[%s1] sm:$0xff]
        %v159 = vld [vmem:[%s1 + $0x8] sm:$0xff]
        %v160 = vld [vmem:[%s1 + $0x10] sm:$0xff]
        %v161 = vld [vmem:[%s1 + $0x18] sm:$0x7]
        loop: start=0, step=1, limit=8
        $region29: #{tpu_custom_call.1} parent=27 // loop_pre_header
          _
        $region30: #{tpu_custom_call.1} parent=27 // loop_header
          %s163 = sphi 0, %s167
          %p164 = scmp.ge.s32.totalorder %s163, 8
        $region31: #{tpu_custom_call.1} parent=27 // loop_header_branch
          %166 = sbr.rel (%p164) target = $region35
        $region32: #{tpu_custom_call.1} parent=27 // loop_body
          %s168 = sadd.s32 %s157, %s163
          %s169 = smul.u32 %s168, 160
          %s170 = scalar_lea.vmem %s155, %s169
          %v171 = vld [vmem:[%s170] sm:$0xff]
          %v172 = vld [vmem:[%s170 + $0x10] sm:$0xff]
          %v173 = vld [vmem:[%s170 + $0x20] sm:$0xff]
          %v174 = vld [vmem:[%s170 + $0x30] sm:$0xff]
          %v175 = vld [vmem:[%s170 + $0x40] sm:$0xff]
          %v176 = vld [vmem:[%s170 + $0x50] sm:$0xff]
          %v177 = vld [vmem:[%s170 + $0x60] sm:$0xff]
          %v178 = vld [vmem:[%s170 + $0x70] sm:$0xff]
          %v179 = vlaneseq
          %v180 = vshrl.u32 %v179, 7
          %v181 = vsub.s32 0, %v180
          %v182 = vrot.slane %v158, %v181
          %v183 = vmul.f32 %v171, %v182
          %v184 = vmul.f32 %v172, %v182
          %v185 = vmul.f32 %v173, %v182
          %v186 = vmul.f32 %v174, %v182
          %v187 = vmul.f32 %v175, %v182
          %v188 = vmul.f32 %v176, %v182
          %v189 = vmul.f32 %v177, %v182
          %v190 = vmul.f32 %v178, %v182
          %v191 = vld [vmem:[%s170 + $0x1] sm:$0xff]
          %v192 = vld [vmem:[%s170 + $0x11] sm:$0xff]
          %v193 = vld [vmem:[%s170 + $0x21] sm:$0xff]
          %v194 = vld [vmem:[%s170 + $0x31] sm:$0xff]
          %v195 = vld [vmem:[%s170 + $0x41] sm:$0xff]
          %v196 = vld [vmem:[%s170 + $0x51] sm:$0xff]
          %v197 = vld [vmem:[%s170 + $0x61] sm:$0xff]
          %v198 = vld [vmem:[%s170 + $0x71] sm:$0xff]
          %v199 = vlaneseq
          %v200 = vshrl.u32 %v199, 7
          %v201 = vsub.s32 1, %v200
          %v202 = vrot.slane %v158, %v201
          %v203 = vmul.f32 %v191, %v202
          %v204 = vmul.f32 %v192, %v202
          %v205 = vmul.f32 %v193, %v202
          %v206 = vmul.f32 %v194, %v202
          %v207 = vmul.f32 %v195, %v202
          %v208 = vmul.f32 %v196, %v202
          %v209 = vmul.f32 %v197, %v202
          %v210 = vmul.f32 %v198, %v202
          %v211 = vadd.f32 %v183, %v203
          %v212 = vadd.f32 %v184, %v204
          %v213 = vadd.f32 %v185, %v205
          %v214 = vadd.f32 %v186, %v206
          %v215 = vadd.f32 %v187, %v207
          %v216 = vadd.f32 %v188, %v208
          %v217 = vadd.f32 %v189, %v209
          %v218 = vadd.f32 %v190, %v210
          %v219 = vld [vmem:[%s170 + $0x2] sm:$0xff]
          %v220 = vld [vmem:[%s170 + $0x12] sm:$0xff]
          %v221 = vld [vmem:[%s170 + $0x22] sm:$0xff]
          %v222 = vld [vmem:[%s170 + $0x32] sm:$0xff]
          %v223 = vld [vmem:[%s170 + $0x42] sm:$0xff]
          %v224 = vld [vmem:[%s170 + $0x52] sm:$0xff]
          %v225 = vld [vmem:[%s170 + $0x62] sm:$0xff]
          %v226 = vld [vmem:[%s170 + $0x72] sm:$0xff]
          %v227 = vlaneseq
          %v228 = vshrl.u32 %v227, 7
          %v229 = vsub.s32 2, %v228
          %v230 = vrot.slane %v158, %v229
          %v231 = vmul.f32 %v219, %v230
          %v232 = vmul.f32 %v220, %v230
          %v233 = vmul.f32 %v221, %v230
          %v234 = vmul.f32 %v222, %v230
          %v235 = vmul.f32 %v223, %v230
          %v236 = vmul.f32 %v224, %v230
          %v237 = vmul.f32 %v225, %v230
          %v238 = vmul.f32 %v226, %v230
          %v239 = vadd.f32 %v211, %v231
          %v240 = vadd.f32 %v212, %v232
          %v241 = vadd.f32 %v213, %v233
          %v242 = vadd.f32 %v214, %v234
          %v243 = vadd.f32 %v215, %v235
          %v244 = vadd.f32 %v216, %v236
          %v245 = vadd.f32 %v217, %v237
          %v246 = vadd.f32 %v218, %v238
          %s247 = sadd.s32 16, %s169
          %s248 = scalar_lea.vmem %s155, %s247
          %v249 = vld [vmem:[%s248] sm:$0xff]
          %v250 = vld [vmem:[%s248 + $0x10] sm:$0xff]
          %v251 = vld [vmem:[%s248 + $0x20] sm:$0xff]
          %v252 = vld [vmem:[%s248 + $0x30] sm:$0xff]
          %v253 = vld [vmem:[%s248 + $0x40] sm:$0xff]
          %v254 = vld [vmem:[%s248 + $0x50] sm:$0xff]
          %v255 = vld [vmem:[%s248 + $0x60] sm:$0xff]
          %v256 = vld [vmem:[%s248 + $0x70] sm:$0xff]
          %v257 = vlaneseq
          %v258 = vshrl.u32 %v257, 7
          %v259 = vsub.s32 3, %v258
          %v260 = vrot.slane %v158, %v259
          %v261 = vmul.f32 %v249, %v260
          %v262 = vmul.f32 %v250, %v260
          %v263 = vmul.f32 %v251, %v260
          %v264 = vmul.f32 %v252, %v260
          %v265 = vmul.f32 %v253, %v260
          %v266 = vmul.f32 %v254, %v260
          %v267 = vmul.f32 %v255, %v260
          %v268 = vmul.f32 %v256, %v260
          %v269 = vadd.f32 %v239, %v261
          %v270 = vadd.f32 %v240, %v262
          %v271 = vadd.f32 %v241, %v263
          %v272 = vadd.f32 %v242, %v264
          %v273 = vadd.f32 %v243, %v265
          %v274 = vadd.f32 %v244, %v266
          %v275 = vadd.f32 %v245, %v267
          %v276 = vadd.f32 %v246, %v268
          %v277 = vld [vmem:[%s248 + $0x1] sm:$0xff]
          %v278 = vld [vmem:[%s248 + $0x11] sm:$0xff]
          %v279 = vld [vmem:[%s248 + $0x21] sm:$0xff]
          %v280 = vld [vmem:[%s248 + $0x31] sm:$0xff]
          %v281 = vld [vmem:[%s248 + $0x41] sm:$0xff]
          %v282 = vld [vmem:[%s248 + $0x51] sm:$0xff]
          %v283 = vld [vmem:[%s248 + $0x61] sm:$0xff]
          %v284 = vld [vmem:[%s248 + $0x71] sm:$0xff]
          %v285 = vlaneseq
          %v286 = vshrl.u32 %v285, 7
          %v287 = vsub.s32 4, %v286
          %v288 = vrot.slane %v158, %v287
          %v289 = vmul.f32 %v277, %v288
          %v290 = vmul.f32 %v278, %v288
          %v291 = vmul.f32 %v279, %v288
          %v292 = vmul.f32 %v280, %v288
          %v293 = vmul.f32 %v281, %v288
          %v294 = vmul.f32 %v282, %v288
          %v295 = vmul.f32 %v283, %v288
          %v296 = vmul.f32 %v284, %v288
          %v297 = vadd.f32 %v269, %v289
          %v298 = vadd.f32 %v270, %v290
          %v299 = vadd.f32 %v271, %v291
          %v300 = vadd.f32 %v272, %v292
          %v301 = vadd.f32 %v273, %v293
          %v302 = vadd.f32 %v274, %v294
          %v303 = vadd.f32 %v275, %v295
          %v304 = vadd.f32 %v276, %v296
          %v305 = vld [vmem:[%s248 + $0x2] sm:$0xff]
          %v306 = vld [vmem:[%s248 + $0x12] sm:$0xff]
          %v307 = vld [vmem:[%s248 + $0x22] sm:$0xff]
          %v308 = vld [vmem:[%s248 + $0x32] sm:$0xff]
          %v309 = vld [vmem:[%s248 + $0x42] sm:$0xff]
          %v310 = vld [vmem:[%s248 + $0x52] sm:$0xff]
          %v311 = vld [vmem:[%s248 + $0x62] sm:$0xff]
          %v312 = vld [vmem:[%s248 + $0x72] sm:$0xff]
          %v313 = vlaneseq
          %v314 = vshrl.u32 %v313, 7
          %v315 = vsub.s32 5, %v314
          %v316 = vrot.slane %v158, %v315
          %v317 = vmul.f32 %v305, %v316
          %v318 = vmul.f32 %v306, %v316
          %v319 = vmul.f32 %v307, %v316
          %v320 = vmul.f32 %v308, %v316
          %v321 = vmul.f32 %v309, %v316
          %v322 = vmul.f32 %v310, %v316
          %v323 = vmul.f32 %v311, %v316
          %v324 = vmul.f32 %v312, %v316
          %v325 = vadd.f32 %v297, %v317
          %v326 = vadd.f32 %v298, %v318
          %v327 = vadd.f32 %v299, %v319
          %v328 = vadd.f32 %v300, %v320
          %v329 = vadd.f32 %v301, %v321
          %v330 = vadd.f32 %v302, %v322
          %v331 = vadd.f32 %v303, %v323
          %v332 = vadd.f32 %v304, %v324
          %s333 = sadd.s32 32, %s169
          %s334 = scalar_lea.vmem %s155, %s333
          %v335 = vld [vmem:[%s334] sm:$0xff]
          %v336 = vld [vmem:[%s334 + $0x10] sm:$0xff]
          %v337 = vld [vmem:[%s334 + $0x20] sm:$0xff]
          %v338 = vld [vmem:[%s334 + $0x30] sm:$0xff]
          %v339 = vld [vmem:[%s334 + $0x40] sm:$0xff]
          %v340 = vld [vmem:[%s334 + $0x50] sm:$0xff]
          %v341 = vld [vmem:[%s334 + $0x60] sm:$0xff]
          %v342 = vld [vmem:[%s334 + $0x70] sm:$0xff]
          %v343 = vlaneseq
          %v344 = vshrl.u32 %v343, 7
          %v345 = vsub.s32 6, %v344
          %v346 = vrot.slane %v158, %v345
          %v347 = vmul.f32 %v335, %v346
          %v348 = vmul.f32 %v336, %v346
          %v349 = vmul.f32 %v337, %v346
          %v350 = vmul.f32 %v338, %v346
          %v351 = vmul.f32 %v339, %v346
          %v352 = vmul.f32 %v340, %v346
          %v353 = vmul.f32 %v341, %v346
          %v354 = vmul.f32 %v342, %v346
          %v355 = vadd.f32 %v325, %v347
          %v356 = vadd.f32 %v326, %v348
          %v357 = vadd.f32 %v327, %v349
          %v358 = vadd.f32 %v328, %v350
          %v359 = vadd.f32 %v329, %v351
          %v360 = vadd.f32 %v330, %v352
          %v361 = vadd.f32 %v331, %v353
          %v362 = vadd.f32 %v332, %v354
          %v363 = vld [vmem:[%s334 + $0x1] sm:$0xff]
          %v364 = vld [vmem:[%s334 + $0x11] sm:$0xff]
          %v365 = vld [vmem:[%s334 + $0x21] sm:$0xff]
          %v366 = vld [vmem:[%s334 + $0x31] sm:$0xff]
          %v367 = vld [vmem:[%s334 + $0x41] sm:$0xff]
          %v368 = vld [vmem:[%s334 + $0x51] sm:$0xff]
          %v369 = vld [vmem:[%s334 + $0x61] sm:$0xff]
          %v370 = vld [vmem:[%s334 + $0x71] sm:$0xff]
          %v371 = vlaneseq
          %v372 = vshrl.u32 %v371, 7
          %v373 = vsub.s32 7, %v372
          %v374 = vrot.slane %v158, %v373
          %v375 = vmul.f32 %v363, %v374
          %v376 = vmul.f32 %v364, %v374
          %v377 = vmul.f32 %v365, %v374
          %v378 = vmul.f32 %v366, %v374
          %v379 = vmul.f32 %v367, %v374
          %v380 = vmul.f32 %v368, %v374
          %v381 = vmul.f32 %v369, %v374
          %v382 = vmul.f32 %v370, %v374
          %v383 = vadd.f32 %v355, %v375
          %v384 = vadd.f32 %v356, %v376
          %v385 = vadd.f32 %v357, %v377
          %v386 = vadd.f32 %v358, %v378
          %v387 = vadd.f32 %v359, %v379
          %v388 = vadd.f32 %v360, %v380
          %v389 = vadd.f32 %v361, %v381
          %v390 = vadd.f32 %v362, %v382
          %v391 = vld [vmem:[%s334 + $0x2] sm:$0xff]
          %v392 = vld [vmem:[%s334 + $0x12] sm:$0xff]
          %v393 = vld [vmem:[%s334 + $0x22] sm:$0xff]
          %v394 = vld [vmem:[%s334 + $0x32] sm:$0xff]
          %v395 = vld [vmem:[%s334 + $0x42] sm:$0xff]
          %v396 = vld [vmem:[%s334 + $0x52] sm:$0xff]
          %v397 = vld [vmem:[%s334 + $0x62] sm:$0xff]
          %v398 = vld [vmem:[%s334 + $0x72] sm:$0xff]
          %v399 = vlaneseq
          %v400 = vshrl.u32 %v399, 7
          %v401 = vsub.s32 0, %v400
          %v402 = vrot.slane %v159, %v401
          %v403 = vmul.f32 %v391, %v402
          %v404 = vmul.f32 %v392, %v402
          %v405 = vmul.f32 %v393, %v402
          %v406 = vmul.f32 %v394, %v402
          %v407 = vmul.f32 %v395, %v402
          %v408 = vmul.f32 %v396, %v402
          %v409 = vmul.f32 %v397, %v402
          %v410 = vmul.f32 %v398, %v402
          %v411 = vadd.f32 %v383, %v403
          %v412 = vadd.f32 %v384, %v404
          %v413 = vadd.f32 %v385, %v405
          %v414 = vadd.f32 %v386, %v406
          %v415 = vadd.f32 %v387, %v407
          %v416 = vadd.f32 %v388, %v408
          %v417 = vadd.f32 %v389, %v409
          %v418 = vadd.f32 %v390, %v410
          %s419 = sadd.s32 %s168, 1
          %s420 = smul.u32 %s419, 160
          %s421 = scalar_lea.vmem %s155, %s420
          %v422 = vld [vmem:[%s421] sm:$0xff]
          %v423 = vld [vmem:[%s421 + $0x10] sm:$0xff]
          %v424 = vld [vmem:[%s421 + $0x20] sm:$0xff]
          %v425 = vld [vmem:[%s421 + $0x30] sm:$0xff]
          %v426 = vld [vmem:[%s421 + $0x40] sm:$0xff]
          %v427 = vld [vmem:[%s421 + $0x50] sm:$0xff]
          %v428 = vld [vmem:[%s421 + $0x60] sm:$0xff]
          %v429 = vld [vmem:[%s421 + $0x70] sm:$0xff]
          %v430 = vlaneseq
          %v431 = vshrl.u32 %v430, 7
          %v432 = vsub.s32 1, %v431
          %v433 = vrot.slane %v159, %v432
          %v434 = vmul.f32 %v422, %v433
          %v435 = vmul.f32 %v423, %v433
          %v436 = vmul.f32 %v424, %v433
          %v437 = vmul.f32 %v425, %v433
          %v438 = vmul.f32 %v426, %v433
          %v439 = vmul.f32 %v427, %v433
          %v440 = vmul.f32 %v428, %v433
          %v441 = vmul.f32 %v429, %v433
          %v442 = vadd.f32 %v411, %v434
          %v443 = vadd.f32 %v412, %v435
          %v444 = vadd.f32 %v413, %v436
          %v445 = vadd.f32 %v414, %v437
          %v446 = vadd.f32 %v415, %v438
          %v447 = vadd.f32 %v416, %v439
          %v448 = vadd.f32 %v417, %v440
          %v449 = vadd.f32 %v418, %v441
          %v450 = vld [vmem:[%s421 + $0x1] sm:$0xff]
          %v451 = vld [vmem:[%s421 + $0x11] sm:$0xff]
          %v452 = vld [vmem:[%s421 + $0x21] sm:$0xff]
          %v453 = vld [vmem:[%s421 + $0x31] sm:$0xff]
          %v454 = vld [vmem:[%s421 + $0x41] sm:$0xff]
          %v455 = vld [vmem:[%s421 + $0x51] sm:$0xff]
          %v456 = vld [vmem:[%s421 + $0x61] sm:$0xff]
          %v457 = vld [vmem:[%s421 + $0x71] sm:$0xff]
          %v458 = vlaneseq
          %v459 = vshrl.u32 %v458, 7
          %v460 = vsub.s32 2, %v459
          %v461 = vrot.slane %v159, %v460
          %v462 = vmul.f32 %v450, %v461
          %v463 = vmul.f32 %v451, %v461
          %v464 = vmul.f32 %v452, %v461
          %v465 = vmul.f32 %v453, %v461
          %v466 = vmul.f32 %v454, %v461
          %v467 = vmul.f32 %v455, %v461
          %v468 = vmul.f32 %v456, %v461
          %v469 = vmul.f32 %v457, %v461
          %v470 = vadd.f32 %v442, %v462
          %v471 = vadd.f32 %v443, %v463
          %v472 = vadd.f32 %v444, %v464
          %v473 = vadd.f32 %v445, %v465
          %v474 = vadd.f32 %v446, %v466
          %v475 = vadd.f32 %v447, %v467
          %v476 = vadd.f32 %v448, %v468
          %v477 = vadd.f32 %v449, %v469
          %v478 = vld [vmem:[%s421 + $0x2] sm:$0xff]
          %v479 = vld [vmem:[%s421 + $0x12] sm:$0xff]
          %v480 = vld [vmem:[%s421 + $0x22] sm:$0xff]
          %v481 = vld [vmem:[%s421 + $0x32] sm:$0xff]
          %v482 = vld [vmem:[%s421 + $0x42] sm:$0xff]
          %v483 = vld [vmem:[%s421 + $0x52] sm:$0xff]
          %v484 = vld [vmem:[%s421 + $0x62] sm:$0xff]
          %v485 = vld [vmem:[%s421 + $0x72] sm:$0xff]
          %v486 = vlaneseq
          %v487 = vshrl.u32 %v486, 7
          %v488 = vsub.s32 3, %v487
          %v489 = vrot.slane %v159, %v488
          %v490 = vmul.f32 %v478, %v489
          %v491 = vmul.f32 %v479, %v489
          %v492 = vmul.f32 %v480, %v489
          %v493 = vmul.f32 %v481, %v489
          %v494 = vmul.f32 %v482, %v489
          %v495 = vmul.f32 %v483, %v489
          %v496 = vmul.f32 %v484, %v489
          %v497 = vmul.f32 %v485, %v489
          %v498 = vadd.f32 %v470, %v490
          %v499 = vadd.f32 %v471, %v491
          %v500 = vadd.f32 %v472, %v492
          %v501 = vadd.f32 %v473, %v493
          %v502 = vadd.f32 %v474, %v494
          %v503 = vadd.f32 %v475, %v495
          %v504 = vadd.f32 %v476, %v496
          %v505 = vadd.f32 %v477, %v497
          %s506 = sadd.s32 16, %s420
          %s507 = scalar_lea.vmem %s155, %s506
          %v508 = vld [vmem:[%s507] sm:$0xff]
          %v509 = vld [vmem:[%s507 + $0x10] sm:$0xff]
          %v510 = vld [vmem:[%s507 + $0x20] sm:$0xff]
          %v511 = vld [vmem:[%s507 + $0x30] sm:$0xff]
          %v512 = vld [vmem:[%s507 + $0x40] sm:$0xff]
          %v513 = vld [vmem:[%s507 + $0x50] sm:$0xff]
          %v514 = vld [vmem:[%s507 + $0x60] sm:$0xff]
          %v515 = vld [vmem:[%s507 + $0x70] sm:$0xff]
          %v516 = vlaneseq
          %v517 = vshrl.u32 %v516, 7
          %v518 = vsub.s32 4, %v517
          %v519 = vrot.slane %v159, %v518
          %v520 = vmul.f32 %v508, %v519
          %v521 = vmul.f32 %v509, %v519
          %v522 = vmul.f32 %v510, %v519
          %v523 = vmul.f32 %v511, %v519
          %v524 = vmul.f32 %v512, %v519
          %v525 = vmul.f32 %v513, %v519
          %v526 = vmul.f32 %v514, %v519
          %v527 = vmul.f32 %v515, %v519
          %v528 = vadd.f32 %v498, %v520
          %v529 = vadd.f32 %v499, %v521
          %v530 = vadd.f32 %v500, %v522
          %v531 = vadd.f32 %v501, %v523
          %v532 = vadd.f32 %v502, %v524
          %v533 = vadd.f32 %v503, %v525
          %v534 = vadd.f32 %v504, %v526
          %v535 = vadd.f32 %v505, %v527
          %v536 = vld [vmem:[%s507 + $0x1] sm:$0xff]
          %v537 = vld [vmem:[%s507 + $0x11] sm:$0xff]
          %v538 = vld [vmem:[%s507 + $0x21] sm:$0xff]
          %v539 = vld [vmem:[%s507 + $0x31] sm:$0xff]
          %v540 = vld [vmem:[%s507 + $0x41] sm:$0xff]
          %v541 = vld [vmem:[%s507 + $0x51] sm:$0xff]
          %v542 = vld [vmem:[%s507 + $0x61] sm:$0xff]
          %v543 = vld [vmem:[%s507 + $0x71] sm:$0xff]
          %v544 = vlaneseq
          %v545 = vshrl.u32 %v544, 7
          %v546 = vsub.s32 5, %v545
          %v547 = vrot.slane %v159, %v546
          %v548 = vmul.f32 %v536, %v547
          %v549 = vmul.f32 %v537, %v547
          %v550 = vmul.f32 %v538, %v547
          %v551 = vmul.f32 %v539, %v547
          %v552 = vmul.f32 %v540, %v547
          %v553 = vmul.f32 %v541, %v547
          %v554 = vmul.f32 %v542, %v547
          %v555 = vmul.f32 %v543, %v547
          %v556 = vadd.f32 %v528, %v548
          %v557 = vadd.f32 %v529, %v549
          %v558 = vadd.f32 %v530, %v550
          %v559 = vadd.f32 %v531, %v551
          %v560 = vadd.f32 %v532, %v552
          %v561 = vadd.f32 %v533, %v553
          %v562 = vadd.f32 %v534, %v554
          %v563 = vadd.f32 %v535, %v555
          %v564 = vld [vmem:[%s507 + $0x2] sm:$0xff]
          %v565 = vld [vmem:[%s507 + $0x12] sm:$0xff]
          %v566 = vld [vmem:[%s507 + $0x22] sm:$0xff]
          %v567 = vld [vmem:[%s507 + $0x32] sm:$0xff]
          %v568 = vld [vmem:[%s507 + $0x42] sm:$0xff]
          %v569 = vld [vmem:[%s507 + $0x52] sm:$0xff]
          %v570 = vld [vmem:[%s507 + $0x62] sm:$0xff]
          %v571 = vld [vmem:[%s507 + $0x72] sm:$0xff]
          %v572 = vlaneseq
          %v573 = vshrl.u32 %v572, 7
          %v574 = vsub.s32 6, %v573
          %v575 = vrot.slane %v159, %v574
          %v576 = vmul.f32 %v564, %v575
          %v577 = vmul.f32 %v565, %v575
          %v578 = vmul.f32 %v566, %v575
          %v579 = vmul.f32 %v567, %v575
          %v580 = vmul.f32 %v568, %v575
          %v581 = vmul.f32 %v569, %v575
          %v582 = vmul.f32 %v570, %v575
          %v583 = vmul.f32 %v571, %v575
          %v584 = vadd.f32 %v556, %v576
          %v585 = vadd.f32 %v557, %v577
          %v586 = vadd.f32 %v558, %v578
          %v587 = vadd.f32 %v559, %v579
          %v588 = vadd.f32 %v560, %v580
          %v589 = vadd.f32 %v561, %v581
          %v590 = vadd.f32 %v562, %v582
          %v591 = vadd.f32 %v563, %v583
          %s592 = sadd.s32 32, %s420
          %s593 = scalar_lea.vmem %s155, %s592
          %v594 = vld [vmem:[%s593] sm:$0xff]
          %v595 = vld [vmem:[%s593 + $0x10] sm:$0xff]
          %v596 = vld [vmem:[%s593 + $0x20] sm:$0xff]
          %v597 = vld [vmem:[%s593 + $0x30] sm:$0xff]
          %v598 = vld [vmem:[%s593 + $0x40] sm:$0xff]
          %v599 = vld [vmem:[%s593 + $0x50] sm:$0xff]
          %v600 = vld [vmem:[%s593 + $0x60] sm:$0xff]
          %v601 = vld [vmem:[%s593 + $0x70] sm:$0xff]
          %v602 = vlaneseq
          %v603 = vshrl.u32 %v602, 7
          %v604 = vsub.s32 7, %v603
          %v605 = vrot.slane %v159, %v604
          %v606 = vmul.f32 %v594, %v605
          %v607 = vmul.f32 %v595, %v605
          %v608 = vmul.f32 %v596, %v605
          %v609 = vmul.f32 %v597, %v605
          %v610 = vmul.f32 %v598, %v605
          %v611 = vmul.f32 %v599, %v605
          %v612 = vmul.f32 %v600, %v605
          %v613 = vmul.f32 %v601, %v605
          %v614 = vadd.f32 %v584, %v606
          %v615 = vadd.f32 %v585, %v607
          %v616 = vadd.f32 %v586, %v608
          %v617 = vadd.f32 %v587, %v609
          %v618 = vadd.f32 %v588, %v610
          %v619 = vadd.f32 %v589, %v611
          %v620 = vadd.f32 %v590, %v612
          %v621 = vadd.f32 %v591, %v613
          %v622 = vld [vmem:[%s593 + $0x1] sm:$0xff]
          %v623 = vld [vmem:[%s593 + $0x11] sm:$0xff]
          %v624 = vld [vmem:[%s593 + $0x21] sm:$0xff]
          %v625 = vld [vmem:[%s593 + $0x31] sm:$0xff]
          %v626 = vld [vmem:[%s593 + $0x41] sm:$0xff]
          %v627 = vld [vmem:[%s593 + $0x51] sm:$0xff]
          %v628 = vld [vmem:[%s593 + $0x61] sm:$0xff]
          %v629 = vld [vmem:[%s593 + $0x71] sm:$0xff]
          %v630 = vlaneseq
          %v631 = vshrl.u32 %v630, 7
          %v632 = vsub.s32 0, %v631
          %v633 = vrot.slane %v160, %v632
          %v634 = vmul.f32 %v622, %v633
          %v635 = vmul.f32 %v623, %v633
          %v636 = vmul.f32 %v624, %v633
          %v637 = vmul.f32 %v625, %v633
          %v638 = vmul.f32 %v626, %v633
          %v639 = vmul.f32 %v627, %v633
          %v640 = vmul.f32 %v628, %v633
          %v641 = vmul.f32 %v629, %v633
          %v642 = vadd.f32 %v614, %v634
          %v643 = vadd.f32 %v615, %v635
          %v644 = vadd.f32 %v616, %v636
          %v645 = vadd.f32 %v617, %v637
          %v646 = vadd.f32 %v618, %v638
          %v647 = vadd.f32 %v619, %v639
          %v648 = vadd.f32 %v620, %v640
          %v649 = vadd.f32 %v621, %v641
          %v650 = vld [vmem:[%s593 + $0x2] sm:$0xff]
          %v651 = vld [vmem:[%s593 + $0x12] sm:$0xff]
          %v652 = vld [vmem:[%s593 + $0x22] sm:$0xff]
          %v653 = vld [vmem:[%s593 + $0x32] sm:$0xff]
          %v654 = vld [vmem:[%s593 + $0x42] sm:$0xff]
          %v655 = vld [vmem:[%s593 + $0x52] sm:$0xff]
          %v656 = vld [vmem:[%s593 + $0x62] sm:$0xff]
          %v657 = vld [vmem:[%s593 + $0x72] sm:$0xff]
          %v658 = vlaneseq
          %v659 = vshrl.u32 %v658, 7
          %v660 = vsub.s32 1, %v659
          %v661 = vrot.slane %v160, %v660
          %v662 = vmul.f32 %v650, %v661
          %v663 = vmul.f32 %v651, %v661
          %v664 = vmul.f32 %v652, %v661
          %v665 = vmul.f32 %v653, %v661
          %v666 = vmul.f32 %v654, %v661
          %v667 = vmul.f32 %v655, %v661
          %v668 = vmul.f32 %v656, %v661
          %v669 = vmul.f32 %v657, %v661
          %v670 = vadd.f32 %v642, %v662
          %v671 = vadd.f32 %v643, %v663
          %v672 = vadd.f32 %v644, %v664
          %v673 = vadd.f32 %v645, %v665
          %v674 = vadd.f32 %v646, %v666
          %v675 = vadd.f32 %v647, %v667
          %v676 = vadd.f32 %v648, %v668
          %v677 = vadd.f32 %v649, %v669
          %s678 = sadd.s32 %s168, 2
          %s679 = smul.u32 %s678, 160
          %s680 = scalar_lea.vmem %s155, %s679
          %v681 = vld [vmem:[%s680] sm:$0xff]
          %v682 = vld [vmem:[%s680 + $0x10] sm:$0xff]
          %v683 = vld [vmem:[%s680 + $0x20] sm:$0xff]
          %v684 = vld [vmem:[%s680 + $0x30] sm:$0xff]
          %v685 = vld [vmem:[%s680 + $0x40] sm:$0xff]
          %v686 = vld [vmem:[%s680 + $0x50] sm:$0xff]
          %v687 = vld [vmem:[%s680 + $0x60] sm:$0xff]
          %v688 = vld [vmem:[%s680 + $0x70] sm:$0xff]
          %v689 = vlaneseq
          %v690 = vshrl.u32 %v689, 7
          %v691 = vsub.s32 2, %v690
          %v692 = vrot.slane %v160, %v691
          %v693 = vmul.f32 %v681, %v692
          %v694 = vmul.f32 %v682, %v692
          %v695 = vmul.f32 %v683, %v692
          %v696 = vmul.f32 %v684, %v692
          %v697 = vmul.f32 %v685, %v692
          %v698 = vmul.f32 %v686, %v692
          %v699 = vmul.f32 %v687, %v692
          %v700 = vmul.f32 %v688, %v692
          %v701 = vadd.f32 %v670, %v693
          %v702 = vadd.f32 %v671, %v694
          %v703 = vadd.f32 %v672, %v695
          %v704 = vadd.f32 %v673, %v696
          %v705 = vadd.f32 %v674, %v697
          %v706 = vadd.f32 %v675, %v698
          %v707 = vadd.f32 %v676, %v699
          %v708 = vadd.f32 %v677, %v700
          %v709 = vld [vmem:[%s680 + $0x1] sm:$0xff]
          %v710 = vld [vmem:[%s680 + $0x11] sm:$0xff]
          %v711 = vld [vmem:[%s680 + $0x21] sm:$0xff]
          %v712 = vld [vmem:[%s680 + $0x31] sm:$0xff]
          %v713 = vld [vmem:[%s680 + $0x41] sm:$0xff]
          %v714 = vld [vmem:[%s680 + $0x51] sm:$0xff]
          %v715 = vld [vmem:[%s680 + $0x61] sm:$0xff]
          %v716 = vld [vmem:[%s680 + $0x71] sm:$0xff]
          %v717 = vlaneseq
          %v718 = vshrl.u32 %v717, 7
          %v719 = vsub.s32 3, %v718
          %v720 = vrot.slane %v160, %v719
          %v721 = vmul.f32 %v709, %v720
          %v722 = vmul.f32 %v710, %v720
          %v723 = vmul.f32 %v711, %v720
          %v724 = vmul.f32 %v712, %v720
          %v725 = vmul.f32 %v713, %v720
          %v726 = vmul.f32 %v714, %v720
          %v727 = vmul.f32 %v715, %v720
          %v728 = vmul.f32 %v716, %v720
          %v729 = vadd.f32 %v701, %v721
          %v730 = vadd.f32 %v702, %v722
          %v731 = vadd.f32 %v703, %v723
          %v732 = vadd.f32 %v704, %v724
          %v733 = vadd.f32 %v705, %v725
          %v734 = vadd.f32 %v706, %v726
          %v735 = vadd.f32 %v707, %v727
          %v736 = vadd.f32 %v708, %v728
          %v737 = vld [vmem:[%s680 + $0x2] sm:$0xff]
          %v738 = vld [vmem:[%s680 + $0x12] sm:$0xff]
          %v739 = vld [vmem:[%s680 + $0x22] sm:$0xff]
          %v740 = vld [vmem:[%s680 + $0x32] sm:$0xff]
          %v741 = vld [vmem:[%s680 + $0x42] sm:$0xff]
          %v742 = vld [vmem:[%s680 + $0x52] sm:$0xff]
          %v743 = vld [vmem:[%s680 + $0x62] sm:$0xff]
          %v744 = vld [vmem:[%s680 + $0x72] sm:$0xff]
          %v745 = vlaneseq
          %v746 = vshrl.u32 %v745, 7
          %v747 = vsub.s32 4, %v746
          %v748 = vrot.slane %v160, %v747
          %v749 = vmul.f32 %v737, %v748
          %v750 = vmul.f32 %v738, %v748
          %v751 = vmul.f32 %v739, %v748
          %v752 = vmul.f32 %v740, %v748
          %v753 = vmul.f32 %v741, %v748
          %v754 = vmul.f32 %v742, %v748
          %v755 = vmul.f32 %v743, %v748
          %v756 = vmul.f32 %v744, %v748
          %v757 = vadd.f32 %v729, %v749
          %v758 = vadd.f32 %v730, %v750
          %v759 = vadd.f32 %v731, %v751
          %v760 = vadd.f32 %v732, %v752
          %v761 = vadd.f32 %v733, %v753
          %v762 = vadd.f32 %v734, %v754
          %v763 = vadd.f32 %v735, %v755
          %v764 = vadd.f32 %v736, %v756
          %s765 = sadd.s32 16, %s679
          %s766 = scalar_lea.vmem %s155, %s765
          %v767 = vld [vmem:[%s766] sm:$0xff]
          %v768 = vld [vmem:[%s766 + $0x10] sm:$0xff]
          %v769 = vld [vmem:[%s766 + $0x20] sm:$0xff]
          %v770 = vld [vmem:[%s766 + $0x30] sm:$0xff]
          %v771 = vld [vmem:[%s766 + $0x40] sm:$0xff]
          %v772 = vld [vmem:[%s766 + $0x50] sm:$0xff]
          %v773 = vld [vmem:[%s766 + $0x60] sm:$0xff]
          %v774 = vld [vmem:[%s766 + $0x70] sm:$0xff]
          %v775 = vlaneseq
          %v776 = vshrl.u32 %v775, 7
          %v777 = vsub.s32 5, %v776
          %v778 = vrot.slane %v160, %v777
          %v779 = vmul.f32 %v767, %v778
          %v780 = vmul.f32 %v768, %v778
          %v781 = vmul.f32 %v769, %v778
          %v782 = vmul.f32 %v770, %v778
          %v783 = vmul.f32 %v771, %v778
          %v784 = vmul.f32 %v772, %v778
          %v785 = vmul.f32 %v773, %v778
          %v786 = vmul.f32 %v774, %v778
          %v787 = vadd.f32 %v757, %v779
          %v788 = vadd.f32 %v758, %v780
          %v789 = vadd.f32 %v759, %v781
          %v790 = vadd.f32 %v760, %v782
          %v791 = vadd.f32 %v761, %v783
          %v792 = vadd.f32 %v762, %v784
          %v793 = vadd.f32 %v763, %v785
          %v794 = vadd.f32 %v764, %v786
          %v795 = vld [vmem:[%s766 + $0x1] sm:$0xff]
          %v796 = vld [vmem:[%s766 + $0x11] sm:$0xff]
          %v797 = vld [vmem:[%s766 + $0x21] sm:$0xff]
          %v798 = vld [vmem:[%s766 + $0x31] sm:$0xff]
          %v799 = vld [vmem:[%s766 + $0x41] sm:$0xff]
          %v800 = vld [vmem:[%s766 + $0x51] sm:$0xff]
          %v801 = vld [vmem:[%s766 + $0x61] sm:$0xff]
          %v802 = vld [vmem:[%s766 + $0x71] sm:$0xff]
          %v803 = vlaneseq
          %v804 = vshrl.u32 %v803, 7
          %v805 = vsub.s32 6, %v804
          %v806 = vrot.slane %v160, %v805
          %v807 = vmul.f32 %v795, %v806
          %v808 = vmul.f32 %v796, %v806
          %v809 = vmul.f32 %v797, %v806
          %v810 = vmul.f32 %v798, %v806
          %v811 = vmul.f32 %v799, %v806
          %v812 = vmul.f32 %v800, %v806
          %v813 = vmul.f32 %v801, %v806
          %v814 = vmul.f32 %v802, %v806
          %v815 = vadd.f32 %v787, %v807
          %v816 = vadd.f32 %v788, %v808
          %v817 = vadd.f32 %v789, %v809
          %v818 = vadd.f32 %v790, %v810
          %v819 = vadd.f32 %v791, %v811
          %v820 = vadd.f32 %v792, %v812
          %v821 = vadd.f32 %v793, %v813
          %v822 = vadd.f32 %v794, %v814
          %v823 = vld [vmem:[%s766 + $0x2] sm:$0xff]
          %v824 = vld [vmem:[%s766 + $0x12] sm:$0xff]
          %v825 = vld [vmem:[%s766 + $0x22] sm:$0xff]
          %v826 = vld [vmem:[%s766 + $0x32] sm:$0xff]
          %v827 = vld [vmem:[%s766 + $0x42] sm:$0xff]
          %v828 = vld [vmem:[%s766 + $0x52] sm:$0xff]
          %v829 = vld [vmem:[%s766 + $0x62] sm:$0xff]
          %v830 = vld [vmem:[%s766 + $0x72] sm:$0xff]
          %v831 = vlaneseq
          %v832 = vshrl.u32 %v831, 7
          %v833 = vsub.s32 7, %v832
          %v834 = vrot.slane %v160, %v833
          %v835 = vmul.f32 %v823, %v834
          %v836 = vmul.f32 %v824, %v834
          %v837 = vmul.f32 %v825, %v834
          %v838 = vmul.f32 %v826, %v834
          %v839 = vmul.f32 %v827, %v834
          %v840 = vmul.f32 %v828, %v834
          %v841 = vmul.f32 %v829, %v834
          %v842 = vmul.f32 %v830, %v834
          %v843 = vadd.f32 %v815, %v835
          %v844 = vadd.f32 %v816, %v836
          %v845 = vadd.f32 %v817, %v837
          %v846 = vadd.f32 %v818, %v838
          %v847 = vadd.f32 %v819, %v839
          %v848 = vadd.f32 %v820, %v840
          %v849 = vadd.f32 %v821, %v841
          %v850 = vadd.f32 %v822, %v842
          %s851 = sadd.s32 32, %s679
          %s852 = scalar_lea.vmem %s155, %s851
          %v853 = vld [vmem:[%s852] sm:$0xff]
          %v854 = vld [vmem:[%s852 + $0x10] sm:$0xff]
          %v855 = vld [vmem:[%s852 + $0x20] sm:$0xff]
          %v856 = vld [vmem:[%s852 + $0x30] sm:$0xff]
          %v857 = vld [vmem:[%s852 + $0x40] sm:$0xff]
          %v858 = vld [vmem:[%s852 + $0x50] sm:$0xff]
          %v859 = vld [vmem:[%s852 + $0x60] sm:$0xff]
          %v860 = vld [vmem:[%s852 + $0x70] sm:$0xff]
          %v861 = vlaneseq
          %v862 = vshrl.u32 %v861, 7
          %v863 = vsub.s32 0, %v862
          %v864 = vrot.slane %v161, %v863
          %v865 = vmul.f32 %v853, %v864
          %v866 = vmul.f32 %v854, %v864
          %v867 = vmul.f32 %v855, %v864
          %v868 = vmul.f32 %v856, %v864
          %v869 = vmul.f32 %v857, %v864
          %v870 = vmul.f32 %v858, %v864
          %v871 = vmul.f32 %v859, %v864
          %v872 = vmul.f32 %v860, %v864
          %v873 = vadd.f32 %v843, %v865
          %v874 = vadd.f32 %v844, %v866
          %v875 = vadd.f32 %v845, %v867
          %v876 = vadd.f32 %v846, %v868
          %v877 = vadd.f32 %v847, %v869
          %v878 = vadd.f32 %v848, %v870
          %v879 = vadd.f32 %v849, %v871
          %v880 = vadd.f32 %v850, %v872
          %v881 = vld [vmem:[%s852 + $0x1] sm:$0xff]
          %v882 = vld [vmem:[%s852 + $0x11] sm:$0xff]
          %v883 = vld [vmem:[%s852 + $0x21] sm:$0xff]
          %v884 = vld [vmem:[%s852 + $0x31] sm:$0xff]
          %v885 = vld [vmem:[%s852 + $0x41] sm:$0xff]
          %v886 = vld [vmem:[%s852 + $0x51] sm:$0xff]
          %v887 = vld [vmem:[%s852 + $0x61] sm:$0xff]
          %v888 = vld [vmem:[%s852 + $0x71] sm:$0xff]
          %v889 = vlaneseq
          %v890 = vshrl.u32 %v889, 7
          %v891 = vsub.s32 1, %v890
          %v892 = vrot.slane %v161, %v891
          %v893 = vmul.f32 %v881, %v892
          %v894 = vmul.f32 %v882, %v892
          %v895 = vmul.f32 %v883, %v892
          %v896 = vmul.f32 %v884, %v892
          %v897 = vmul.f32 %v885, %v892
          %v898 = vmul.f32 %v886, %v892
          %v899 = vmul.f32 %v887, %v892
          %v900 = vmul.f32 %v888, %v892
          %v901 = vadd.f32 %v873, %v893
          %v902 = vadd.f32 %v874, %v894
          %v903 = vadd.f32 %v875, %v895
          %v904 = vadd.f32 %v876, %v896
          %v905 = vadd.f32 %v877, %v897
          %v906 = vadd.f32 %v878, %v898
          %v907 = vadd.f32 %v879, %v899
          %v908 = vadd.f32 %v880, %v900
          %v909 = vld [vmem:[%s852 + $0x2] sm:$0xff]
          %v910 = vld [vmem:[%s852 + $0x12] sm:$0xff]
          %v911 = vld [vmem:[%s852 + $0x22] sm:$0xff]
          %v912 = vld [vmem:[%s852 + $0x32] sm:$0xff]
          %v913 = vld [vmem:[%s852 + $0x42] sm:$0xff]
          %v914 = vld [vmem:[%s852 + $0x52] sm:$0xff]
          %v915 = vld [vmem:[%s852 + $0x62] sm:$0xff]
          %v916 = vld [vmem:[%s852 + $0x72] sm:$0xff]
          %v917 = vlaneseq
          %v918 = vshrl.u32 %v917, 7
          %v919 = vsub.s32 2, %v918
          %v920 = vrot.slane %v161, %v919
          %v921 = vmul.f32 %v909, %v920
          %v922 = vmul.f32 %v910, %v920
          %v923 = vmul.f32 %v911, %v920
          %v924 = vmul.f32 %v912, %v920
          %v925 = vmul.f32 %v913, %v920
          %v926 = vmul.f32 %v914, %v920
          %v927 = vmul.f32 %v915, %v920
          %v928 = vmul.f32 %v916, %v920
          %v929 = vadd.f32 %v901, %v921
          %v930 = vadd.f32 %v902, %v922
          %v931 = vadd.f32 %v903, %v923
          %v932 = vadd.f32 %v904, %v924
          %v933 = vadd.f32 %v905, %v925
          %v934 = vadd.f32 %v906, %v926
          %v935 = vadd.f32 %v907, %v927
          %v936 = vadd.f32 %v908, %v928
          %s937 = smul.u32 %s163, 64
          %s938 = scalar_lea.vmem %s150, %s937 [#allocation2]
          %939 = vst [vmem:[%s938] sm:$0xff] %v929
          %940 = vst [vmem:[%s938 + $0x8] sm:$0xff] %v930
          %941 = vst [vmem:[%s938 + $0x10] sm:$0xff] %v931
          %942 = vst [vmem:[%s938 + $0x18] sm:$0xff] %v932
          %943 = vst [vmem:[%s938 + $0x20] sm:$0xff] %v933
          %944 = vst [vmem:[%s938 + $0x28] sm:$0xff] %v934
          %945 = vst [vmem:[%s938 + $0x30] sm:$0xff] %v935
          %946 = vst [vmem:[%s938 + $0x38] sm:$0xff] %v936
        $region33: #{tpu_custom_call.1} parent=27 // loop_footer
          %s167 = sadd.s32 1, %s163
        $region34: #{tpu_custom_call.1} parent=27 // loop_footer_branch
          %162 = sbr.rel target = $region30
        $region35: #{tpu_custom_call.1} parent=27 // loop_exit
          _
        %s947 = sand.u32 %s85, 1
        %s948 = scalar_lea.sflag [#allocation3], %s947
        %s949 = sand.u32 %s85, 1
        %s950 = smul.addr %s949, 512
        %s951 = scalar_lea.vmem [#allocation2], %s950
        // Predicated region
        $region36: #{tpu_custom_call.1} parent=27 // pred_check
          %p952 = pneg %p95
        $region37: #{tpu_custom_call.1} parent=27 // pred_check_branch
          %954 = sbr.rel (%p952) target = $region39
        $region38: #{tpu_custom_call.1} parent=27 // pred_region
          %s955 = smul.u32 8, %s21
          %s957 = ssub.s32 8192, 8192
          %958 = vsyncadd %s948, %s957
          %s959 = smul.addr %s955, 8
          %s960 = smul.addr %s20, 64
          %s961 = sadd.s32 %s959, %s960
          %s962 = smul.addr %s961, 128
          %s963 = scalar_lea.hbm %s2, %s962
          %s964 = sshll.u32 %s951, 4
          %s965 = int_to_ptr.vmem [resolvable:$true] %s964
          %970 = dma.vmem_to_hbm [thread:$0]  %s965, 8192, %s963, %s948, 128, 128, 8
        $region39: #{tpu_custom_call.1} parent=27 // pred_fallthru
          _
      $region28: #{tpu_custom_call.1} parent=5 // pred_fallthru
        _
      %p971 = scmp.le.s32.totalorder 2, %s11
      // Predicated region
      $region40: #{tpu_custom_call.1} parent=5 // pred_check
        %p972 = pneg %p971
      $region41: #{tpu_custom_call.1} parent=5 // pred_check_branch
        %974 = sbr.rel (%p972) target = $region43
      $region42: #{tpu_custom_call.1} parent=5 // pred_region
        %s975 = ssub.s32 %s11, 2
        // Predicated region
        $region44: #{tpu_custom_call.1} parent=42 // pred_check
          %p976 = pneg %p101
        $region45: #{tpu_custom_call.1} parent=42 // pred_check_branch
          %978 = sbr.rel (%p976) target = $region47
        $region46: #{tpu_custom_call.1} parent=42 // pred_region
          %s979 = sand.u32 %s86, 1
          %s980 = scalar_lea.sflag [#allocation3], %s979
          %s981 = sand.u32 %s86, 1
          %s982 = smul.addr %s981, 512
          %s983 = scalar_lea.vmem [#allocation2], %s982
          %984 = dma.done %s980, 8192
        $region47: #{tpu_custom_call.1} parent=42 // pred_fallthru
          _
      $region43: #{tpu_custom_call.1} parent=5 // pred_fallthru
        _
    $region6: #{tpu_custom_call.1} parent=1 // loop_footer
      %s15 = sadd.s32 1, %s11
    $region7: #{tpu_custom_call.1} parent=1 // loop_footer_branch
      %10 = sbr.rel target = $region3
    $region8: #{tpu_custom_call.1} parent=1 // loop_exit
      _
    %985 = vsyncpa [#allocation3], 1
    %s986 = scalar_lea.sflag [#allocation3], 1
    %987 = vsyncpa %s986, 1

</llo_original>
